<compile_context>
chip_gen: v7x
topology: tpu7x:2x2x1
jax: 0.10.0
libtpu: 0.0.40
codegen_flags: <defaults>
</compile_context>

<pallas_src>
import functools

import jax
import jax.numpy as jnp
from jax import lax
from jax.experimental import pallas as pl
from jax.experimental.pallas import tpu as pltpu

_MB = 1024 * 1024


def _default_tiles():
    """Pick (tq, tk) from the part's VMEM: smaller tiles on 64 MiB parts (v7x)."""
    vmem = 128 * _MB
    try:
        vmem = getattr(pltpu.get_tpu_info(), "vmem_capacity_bytes", vmem)
    except Exception:
        pass
    if vmem <= 64 * _MB:
        return 256, 256
    return 512, 512


# ----------------------------------------------------------------------------
# Linear (x @ W + b) kernels — used for W_Q / W_k / W_V (possibly fused) and fc.
# ----------------------------------------------------------------------------
def _linear_simple_kernel(x_ref, w_ref, b_ref, o_ref):
    # x: (tm, Kin)  w: (Kin, N)  b: (1, N)  o: (tm, N)
    y = jnp.dot(x_ref[...], w_ref[...], preferred_element_type=jnp.float32)
    o_ref[...] = (y + b_ref[...]).astype(o_ref.dtype)


def _linear_ktiled_kernel(x_ref, w_ref, b_ref, o_ref, acc_ref):
    # Contraction tiled over grid axis 1 with an f32 VMEM accumulator.
    @pl.when(pl.program_id(1) == 0)
    def _init():
        acc_ref[...] = jnp.zeros_like(acc_ref)

    acc_ref[...] += jnp.dot(x_ref[...], w_ref[...],
                            preferred_element_type=jnp.float32)

    @pl.when(pl.program_id(1) == pl.num_programs(1) - 1)
    def _finalize():
        o_ref[...] = (acc_ref[...] + b_ref[...]).astype(o_ref.dtype)


def _linear(x, w, b, *, tm=512):
    """y = x @ w + b for x of shape [..., Kin], w [Kin, N], b [N]."""
    *lead, k_in = x.shape
    n = w.shape[1]
    x2 = x.reshape(-1, k_in)
    m = x2.shape[0]
    tm = min(tm, m)
    mp = pl.cdiv(m, tm) * tm
    if mp != m:
        x2 = jnp.pad(x2, ((0, mp - m), (0, 0)))
    b2 = b.reshape(1, n)

    # Keep the whole weight resident only when the contraction is small; a
    # large d_model weight (e.g. 4096x4096 f32 = 64 MiB) would not fit v7x
    # VMEM, so tile K with an accumulator instead.
    tk = 512 if (k_in >= 1024 and k_in % 512 == 0) else k_in

    if tk == k_in:
        out = pl.pallas_call(
            _linear_simple_kernel,
            out_shape=jax.ShapeDtypeStruct((mp, n), x.dtype),
            grid=(mp // tm,),
            in_specs=[
                pl.BlockSpec((tm, k_in), lambda i: (i, 0)),
                pl.BlockSpec((k_in, n), lambda i: (0, 0)),
                pl.BlockSpec((1, n), lambda i: (0, 0)),
            ],
            out_specs=pl.BlockSpec((tm, n), lambda i: (i, 0)),
            compiler_params=pltpu.CompilerParams(
                dimension_semantics=("parallel",),
                vmem_limit_bytes=48 * _MB),
        )(x2, w, b2)
    else:
        out = pl.pallas_call(
            _linear_ktiled_kernel,
            out_shape=jax.ShapeDtypeStruct((mp, n), x.dtype),
            grid=(mp // tm, k_in // tk),
            in_specs=[
                pl.BlockSpec((tm, tk), lambda i, kk: (i, kk)),
                pl.BlockSpec((tk, n), lambda i, kk: (kk, 0)),
                pl.BlockSpec((1, n), lambda i, kk: (0, 0)),
            ],
            out_specs=pl.BlockSpec((tm, n), lambda i, kk: (i, 0)),
            scratch_shapes=[pltpu.VMEM((tm, n), jnp.float32)],
            compiler_params=pltpu.CompilerParams(
                dimension_semantics=("parallel", "arbitrary"),
                vmem_limit_bytes=48 * _MB),
        )(x2, w, b2)
    return out[:m].reshape(*lead, n)


# ----------------------------------------------------------------------------
# Attention kernels: one (batch, q-tile) per grid step, all heads per step.
# ----------------------------------------------------------------------------
def _attn_single_kernel(q_ref, k_ref, v_ref, m_ref, o_ref, *, n_head, d_q, d_v):
    """Fast path: whole key range in one tile — plain row softmax, no scratch,
    no online-softmax rescale chain, direct lane-slice stores."""
    q = q_ref[0]            # [tq, H*Dq]
    k = k_ref[0]            # [Lk, H*Dq]
    v = v_ref[0]            # [Lk, H*Dv]
    # TODO(synk): bound this static head unroll (head-group grid axis / fori)
    # if n_head grows large enough that bundle dumps show vreg spills.
    for h in range(n_head):
        qh = q[:, h * d_q:(h + 1) * d_q]
        kh = k[:, h * d_q:(h + 1) * d_q]
        vh = v[:, h * d_v:(h + 1) * d_v]
        mh = m_ref[0, h]                                  # [tq, Lk] int8
        # s[lq, lk] = sum_d qh[lq, d] * kh[lk, d]  (no k.T materialization)
        s = lax.dot_general(qh, kh, (((1,), (1,)), ((), ())),
                            preferred_element_type=jnp.float32)
        # masked_fill_(mask, 1e-9): faithful to the PyTorch source (not -inf).
        s = jnp.where(mh != 0, jnp.float32(1e-9), s)
        m_row = jnp.max(s, axis=-1, keepdims=True)
        p = jnp.exp(s - m_row)                            # keep P in f32
        denom = jnp.sum(p, axis=-1, keepdims=True)
        ctx = jnp.dot(p, vh, preferred_element_type=jnp.float32)
        # Direct store into the lane-dense [tq, H*Dv] output block (no concat).
        o_ref[0, :, h * d_v:(h + 1) * d_v] = (ctx / denom).astype(o_ref.dtype)


def _attn_tiled_kernel(q_ref, k_ref, v_ref, m_ref, o_ref, m_sc, l_sc, acc_sc,
                       *, n_head, d_q, d_v, tk, lk_real, has_pad):
    """Online softmax over the Lk grid axis.  Scratch layout:
       m_sc/l_sc: [tq, H] f32 (compact, no 128-lane-padded (·,·,1) buffers),
       acc_sc:    [tq, H*Dv] f32 (lane-dense, same layout as the output)."""
    kt = pl.program_id(2)

    @pl.when(kt == 0)
    def _init():
        m_sc[...] = jnp.full_like(m_sc, -jnp.inf)
        l_sc[...] = jnp.zeros_like(l_sc)
        acc_sc[...] = jnp.zeros_like(acc_sc)

    q = q_ref[0]            # [tq, H*Dq]
    k = k_ref[0]            # [tk, H*Dq]
    v = v_ref[0]            # [tk, H*Dv]

    for h in range(n_head):                      # static unroll over heads
        qh = q[:, h * d_q:(h + 1) * d_q]
        kh = k[:, h * d_q:(h + 1) * d_q]
        vh = v[:, h * d_v:(h + 1) * d_v]
        mh = m_ref[0, h]                         # [tq, tk] int8
        s = lax.dot_general(qh, kh, (((1,), (1,)), ((), ())),
                            preferred_element_type=jnp.float32)
        s = jnp.where(mh != 0, jnp.float32(1e-9), s)
        if has_pad:
            # Padded key columns get -inf (zero softmax weight) — numerically
            # exact and independent of the module's 1e-9 mask semantics.
            col = kt * tk + lax.broadcasted_iota(jnp.int32, s.shape, 1)
            s = jnp.where(col >= lk_real, -jnp.inf, s)

        m_prev = m_sc[:, h:h + 1]                                   # [tq, 1]
        m_new = jnp.maximum(m_prev, jnp.max(s, axis=-1, keepdims=True))
        alpha = jnp.exp(m_prev - m_new)
        p = jnp.exp(s - m_new)                                      # f32
        l_sc[:, h:h + 1] = alpha * l_sc[:, h:h + 1] + jnp.sum(
            p, axis=-1, keepdims=True)
        csl = slice(h * d_v, (h + 1) * d_v)
        acc_sc[:, csl] = alpha * acc_sc[:, csl] + jnp.dot(
            p, vh, preferred_element_type=jnp.float32)
        m_sc[:, h:h + 1] = m_new

    @pl.when(kt == pl.num_programs(2) - 1)
    def _finalize():
        # Per-head lane-slice stores straight into the lane-dense output block.
        for h in range(n_head):
            csl = slice(h * d_v, (h + 1) * d_v)
            o_ref[0, :, csl] = (acc_sc[:, csl] /
                                l_sc[:, h:h + 1]).astype(o_ref.dtype)


def _attention(q, k, v, mask_bhqk, *, n_head, d_q, d_v, tq=None, tk=None,
               qkv_cols=(0, 0, 0)):
    """q: [B, Lq, ·], k/v: [B, Lk, ·] (possibly one fused [B, L, 3*H*D] tensor
    passed three times and selected via qkv_cols block-column indices),
    mask_bhqk: [B, H, Lq, Lk] int8  ->  [B, Lq, H*Dv]."""
    b, l_q = q.shape[0], q.shape[1]
    l_k = k.shape[1]
    out_dtype = q.dtype
    c_q = n_head * d_q
    c_v = n_head * d_v

    dtq, dtk = _default_tiles()
    tq = dtq if tq is None else tq
    tk = dtk if tk is None else tk
    fused = (q is k) and (k is v)
    if fused:
        # Self-attention fused layout: identical Lq/Lk tiling so the shared
        # tensor needs at most one padding.
        tq = tk = min(tq, tk)

    # Tiles equal to the full length are always legal; otherwise multiples
    # of (8, 128).
    tq_eff = l_q if l_q <= tq else tq
    tk_eff = l_k if l_k <= tk else tk
    l_q_pad = pl.cdiv(l_q, tq_eff) * tq_eff
    l_k_pad = pl.cdiv(l_k, tk_eff) * tk_eff
    pad_q = l_q_pad - l_q
    pad_k = l_k_pad - l_k

    if pad_q or pad_k:
        if fused:
            q = k = v = jnp.pad(q, ((0, 0), (0, max(pad_q, pad_k)), (0, 0)))
        else:
            if pad_q:
                q = jnp.pad(q, ((0, 0), (0, pad_q), (0, 0)))
            if pad_k:
                k = jnp.pad(k, ((0, 0), (0, pad_k), (0, 0)))
                v = jnp.pad(v, ((0, 0), (0, pad_k), (0, 0)))
        mask_bhqk = jnp.pad(mask_bhqk,
                            ((0, 0), (0, 0), (0, pad_q), (0, pad_k)))

    qc, kc, vc = qkv_cols
    n_qt = l_q_pad // tq_eff
    n_kt = l_k_pad // tk_eff

    if n_kt == 1:
        # ------------------ fast path: single K tile, no scratch ------------
        kernel = functools.partial(_attn_single_kernel,
                                   n_head=n_head, d_q=d_q, d_v=d_v)
        out = pl.pallas_call(
            kernel,
            out_shape=jax.ShapeDtypeStruct((b, l_q_pad, c_v), out_dtype),
            grid=(b, n_qt),
            in_specs=[
                pl.BlockSpec((1, tq_eff, c_q), lambda bi, qi, c=qc: (bi, qi, c)),
                pl.BlockSpec((1, tk_eff, c_q), lambda bi, qi, c=kc: (bi, 0, c)),
                pl.BlockSpec((1, tk_eff, c_v), lambda bi, qi, c=vc: (bi, 0, c)),
                pl.BlockSpec((1, n_head, tq_eff, tk_eff),
                             lambda bi, qi: (bi, 0, qi, 0)),
            ],
            out_specs=pl.BlockSpec((1, tq_eff, c_v), lambda bi, qi: (bi, qi, 0)),
            compiler_params=pltpu.CompilerParams(
                dimension_semantics=("parallel", "parallel"),
                vmem_limit_bytes=48 * _MB),
        )(q, k, v, mask_bhqk)
    else:
        # ------------------ tiled path: online softmax over Lk --------------
        kernel = functools.partial(_attn_tiled_kernel,
                                   n_head=n_head, d_q=d_q, d_v=d_v,
                                   tk=tk_eff, lk_real=l_k, has_pad=pad_k > 0)
        out = pl.pallas_call(
            kernel,
            out_shape=jax.ShapeDtypeStruct((b, l_q_pad, c_v), out_dtype),
            grid=(b, n_qt, n_kt),
            in_specs=[
                pl.BlockSpec((1, tq_eff, c_q),
                             lambda bi, qi, ki, c=qc: (bi, qi, c)),
                pl.BlockSpec((1, tk_eff, c_q),
                             lambda bi, qi, ki, c=kc: (bi, ki, c)),
                pl.BlockSpec((1, tk_eff, c_v),
                             lambda bi, qi, ki, c=vc: (bi, ki, c)),
                pl.BlockSpec((1, n_head, tq_eff, tk_eff),
                             lambda bi, qi, ki: (bi, 0, qi, ki)),
            ],
            out_specs=pl.BlockSpec((1, tq_eff, c_v),
                                   lambda bi, qi, ki: (bi, qi, 0)),
            scratch_shapes=[
                pltpu.VMEM((tq_eff, n_head), jnp.float32),   # running max
                pltpu.VMEM((tq_eff, n_head), jnp.float32),   # running denom
                pltpu.VMEM((tq_eff, c_v), jnp.float32),      # lane-dense acc
            ],
            compiler_params=pltpu.CompilerParams(
                dimension_semantics=("parallel", "parallel", "arbitrary"),
                vmem_limit_bytes=48 * _MB),
        )(q, k, v, mask_bhqk)

    if pad_q:
        out = out[:, :l_q, :]
    return out


# ----------------------------------------------------------------------------
# Full MultiHeadAttention forward.
# ----------------------------------------------------------------------------
def multi_head_attention(Q, K, V, mask, params, *, n_head, d_q, d_v,
                         tq=None, tk=None, self_attention=None):
    """Q, K, V: [B, L, d_model]; mask: [B, Lq, Lk, H] bool -> [B, Lq, d_model].
    Set self_attention=True (static) when Q, K and V are the same tensor to
    fuse the three input projections."""
    if self_attention is None:
        self_attention = (Q is K) and (K is V)
    fuse_qkv = (self_attention and d_q == d_v and (n_head * d_q) % 128 == 0)

    if fuse_qkv:
        # One projection pass over the activations; the fused [B, L, 3*H*D]
        # result is consumed by the attention kernel via per-operand BlockSpec
        # column indices — no wrapper-side slicing copies.
        w = jnp.concatenate([params["wq"], params["wk"], params["wv"]], axis=1)
        bias = jnp.concatenate([params["bq"], params["bk"], params["bv"]])
        qkv = _linear(Q, w, bias)                        # [B, L, 3*H*Dq]
        q = k = v = qkv
        cols = (0, 1, 2)
    else:
        q = _linear(Q, params["wq"], params["bq"])       # [B, Lq, H*Dq]
        k = _linear(K, params["wk"], params["bk"])       # [B, Lk, H*Dq]
        v = _linear(V, params["wv"], params["bv"])       # [B, Lk, H*Dv]
        cols = (0, 0, 0)

    # Only wrapper-side transpose: the mask, moved as int8 (4x less than int32).
    # TODO(synk): for structured (padding/causal) masks, generate the mask
    # in-kernel from per-row lengths instead of streaming O(B*H*L^2) bytes.
    m = jnp.transpose(mask, (0, 3, 1, 2)).astype(jnp.int8)   # [B, H, Lq, Lk]
    ctx = _attention(q, k, v, m, n_head=n_head, d_q=d_q, d_v=d_v,
                     tq=tq, tk=tk, qkv_cols=cols)            # [B, Lq, H*Dv]
    return _linear(ctx, params["wo"], params["bo"])          # [B, Lq, d_model]


# ----------------------------------------------------------------------------
# Pure-JAX reference (mirrors the PyTorch module exactly).
# ----------------------------------------------------------------------------
def _reference(Q, K, V, mask, params, *, n_head, d_q, d_v):
    hp = lax.Precision.HIGHEST
    B, L, _ = Q.shape
    q = (jnp.matmul(Q, params["wq"], precision=hp) + params["bq"]
         ).reshape(B, L, n_head, d_q)
    k = (jnp.matmul(K, params["wk"], precision=hp) + params["bk"]
         ).reshape(B, -1, n_head, d_q)
    v = (jnp.matmul(V, params["wv"], precision=hp) + params["bv"]
         ).reshape(B, -1, n_head, d_v)
    scale = jnp.einsum("abcd,aecd->abec", q, k, precision=hp)
    scale = jnp.where(mask, jnp.float32(1e-9), scale)
    p = jax.nn.softmax(scale, axis=-2)
    ctx = jnp.einsum("abcd,acde->abde", p, v, precision=hp)
    return (jnp.matmul(ctx.reshape(B, L, n_head * d_v), params["wo"],
                       precision=hp) + params["bo"])


if __name__ == "__main__":
    def init_params(key, d_model, n_head, d_q, d_v):
        ks = jax.random.split(key, 8)

        def w(kk, shape):
            return jax.random.normal(kk, shape, jnp.float32) * (shape[0] ** -0.5)

        def bv(kk, shape):
            return jax.random.normal(kk, shape, jnp.float32) * 0.02

        return {
            "wq": w(ks[0], (d_model, n_head * d_q)), "bq": bv(ks[1], (n_head * d_q,)),
            "wk": w(ks[2], (d_model, n_head * d_q)), "bk": bv(ks[3], (n_head * d_q,)),
            "wv": w(ks[4], (d_model, n_head * d_v)), "bv": bv(ks[5], (n_head * d_v,)),
            "wo": w(ks[6], (n_head * d_v, d_model)), "bo": bv(ks[7], (d_model,)),
        }

    key = jax.random.PRNGKey(0)
    ks = jax.random.split(key, 10)
    n_head, d_q, d_v = 4, 32, 32

    # --- Test 1: small cross-attention — fast path, separate projections -----
    B, L, d_model = 2, 16, 64
    params1 = init_params(ks[0], d_model, n_head, d_q, d_v)
    Q = jax.random.normal(ks[1], (B, L, d_model), jnp.float32)
    Kx = jax.random.normal(ks[2], (B, L, d_model), jnp.float32)
    Vx = jax.random.normal(ks[3], (B, L, d_model), jnp.float32)
    mask = jax.random.bernoulli(ks[4], 0.25, (B, L, L, n_head))

    fwd1 = jax.jit(functools.partial(multi_head_attention,
                                     n_head=n_head, d_q=d_q, d_v=d_v))
    out1 = jax.block_until_ready(fwd1(Q, Kx, Vx, mask, params1))
    ref1 = _reference(Q, Kx, Vx, mask, params1, n_head=n_head, d_q=d_q, d_v=d_v)
    assert out1.shape == (B, L, d_model), out1.shape
    assert jnp.allclose(out1, ref1, atol=2e-4, rtol=2e-4), (
        float(jnp.max(jnp.abs(out1 - ref1))))

    # --- Test 2: self-attention — fused QKV projection, K-tiled linear,
    #     Lq/Lk tiling with padding and the online-softmax path --------------
    B2, L2, d_model2 = 2, 200, 1024
    params2 = init_params(ks[5], d_model2, n_head, d_q, d_v)
    X = jax.random.normal(ks[6], (B2, L2, d_model2), jnp.float32)
    mask2 = jax.random.bernoulli(ks[7], 0.25, (B2, L2, L2, n_head))

    fwd2 = jax.jit(functools.partial(multi_head_attention,
                                     n_head=n_head, d_q=d_q, d_v=d_v,
                                     tq=128, tk=128, self_attention=True))
    out2 = jax.block_until_ready(fwd2(X, X, X, mask2, params2))
    ref2 = _reference(X, X, X, mask2, params2, n_head=n_head, d_q=d_q, d_v=d_v)
    assert out2.shape == (B2, L2, d_model2), out2.shape
    assert jnp.allclose(out2, ref2, atol=2e-4, rtol=2e-4), (
        float(jnp.max(jnp.abs(out2 - ref2))))

    print("KERNEL_OK")
</pallas_src>

<mosaic_0001>
module attributes {stable_mosaic.version = 11 : i64} {
  func.func @_linear_simple_kernel(%arg0: i32, %arg1: memref<32x64xf32, #tpu.memory_space<vmem>>, %arg2: memref<64x128xf32, #tpu.memory_space<vmem>>, %arg3: memref<1x128xf32, #tpu.memory_space<vmem>>, %arg4: memref<32x128xf32, #tpu.memory_space<vmem>>) attributes {dimension_semantics = [#tpu.dimension_semantics<parallel>], iteration_bounds = array<i64: 1>, scalar_prefetch = 0 : i64, scratch_operands = 0 : i64, tpu.core_type = #tpu.core_type<tc>, window_params = [{transform_indices = @transform_0, window_bounds = array<i64: 32, 64>}, {pipeline_mode = #tpu.pipeline_mode<synchronous>, transform_indices = @transform_1, window_bounds = array<i64: 64, 128>}, {pipeline_mode = #tpu.pipeline_mode<synchronous>, transform_indices = @transform_2, window_bounds = array<i64: 1, 128>}, {transform_indices = @transform_3, window_bounds = array<i64: 32, 128>}]} {
    %c0 = arith.constant 0 : index
    %c0_0 = arith.constant 0 : index
    %0 = vector.load %arg1[%c0, %c0_0] : memref<32x64xf32, #tpu.memory_space<vmem>>, vector<32x64xf32>
    %c0_1 = arith.constant 0 : index
    %c0_2 = arith.constant 0 : index
    %1 = vector.load %arg2[%c0_1, %c0_2] : memref<64x128xf32, #tpu.memory_space<vmem>>, vector<64x128xf32>
    %cst = arith.constant dense<0.000000e+00> : vector<32x128xf32>
    %2 = tpu.matmul %0, %1, %cst {dimension_numbers = #tpu.dot_dimension_numbers<[1], [0], [0], [1], [0, 0, 1, 1], [], []>} : vector<32x64xf32>, vector<64x128xf32>, vector<32x128xf32> -> vector<32x128xf32>
    %c0_3 = arith.constant 0 : index
    %c0_4 = arith.constant 0 : index
    %3 = vector.load %arg3[%c0_3, %c0_4] : memref<1x128xf32, #tpu.memory_space<vmem>>, vector<1x128xf32>
    %4 = vector.broadcast %3 : vector<1x128xf32> to vector<32x128xf32>
    %5 = arith.addf %2, %4 : vector<32x128xf32>
    %c0_5 = arith.constant 0 : index
    %c0_6 = arith.constant 0 : index
    %6 = vector.load %arg4[%c0_5, %c0_6] : memref<32x128xf32, #tpu.memory_space<vmem>>, vector<32x128xf32>
    tpu.vector_store %arg4[%c0_5, %c0_6], %5 {strides = array<i32>} : memref<32x128xf32, #tpu.memory_space<vmem>>, vector<32x128xf32>,
    return
  }
  func.func @transform_0(%arg0: i32) -> (i32, i32) {
    %c0_i32 = arith.constant 0 : i32
    %c0_i32_0 = arith.constant 0 : i32
    return %arg0, %c0_i32 : i32, i32
  }
  func.func @transform_1(%arg0: i32) -> (i32, i32) {
    %c0_i32 = arith.constant 0 : i32
    %c0_i32_0 = arith.constant 0 : i32
    %c0_i32_1 = arith.constant 0 : i32
    return %c0_i32, %c0_i32_0 : i32, i32
  }
  func.func @transform_2(%arg0: i32) -> (i32, i32) {
    %c0_i32 = arith.constant 0 : i32
    %c0_i32_0 = arith.constant 0 : i32
    %c0_i32_1 = arith.constant 0 : i32
    return %c0_i32, %c0_i32_0 : i32, i32
  }
  func.func @transform_3(%arg0: i32) -> (i32, i32) {
    %c0_i32 = arith.constant 0 : i32
    %c0_i32_0 = arith.constant 0 : i32
    return %arg0, %c0_i32 : i32, i32
  }
}

module attributes {stable_mosaic.version = 11 : i64} {
  func.func @_linear_simple_kernel(%arg0: i32, %arg1: memref<32x64xf32, #tpu.memory_space<vmem>>, %arg2: memref<64x128xf32, #tpu.memory_space<vmem>>, %arg3: memref<1x128xf32, #tpu.memory_space<vmem>>, %arg4: memref<32x128xf32, #tpu.memory_space<vmem>>) attributes {dimension_semantics = [#tpu.dimension_semantics<parallel>], iteration_bounds = array<i64: 1>, scalar_prefetch = 0 : i64, scratch_operands = 0 : i64, tpu.core_type = #tpu.core_type<tc>, window_params = [{transform_indices = @transform_0, window_bounds = array<i64: 32, 64>}, {pipeline_mode = #tpu.pipeline_mode<synchronous>, transform_indices = @transform_1, window_bounds = array<i64: 64, 128>}, {pipeline_mode = #tpu.pipeline_mode<synchronous>, transform_indices = @transform_2, window_bounds = array<i64: 1, 128>}, {transform_indices = @transform_3, window_bounds = array<i64: 32, 128>}]} {
    %c0 = arith.constant 0 : index
    %c0_0 = arith.constant 0 : index
    %0 = vector.load %arg1[%c0, %c0_0] : memref<32x64xf32, #tpu.memory_space<vmem>>, vector<32x64xf32>
    %c0_1 = arith.constant 0 : index
    %c0_2 = arith.constant 0 : index
    %1 = vector.load %arg2[%c0_1, %c0_2] : memref<64x128xf32, #tpu.memory_space<vmem>>, vector<64x128xf32>
    %cst = arith.constant dense<0.000000e+00> : vector<32x128xf32>
    %2 = tpu.matmul %0, %1, %cst {dimension_numbers = #tpu.dot_dimension_numbers<[1], [0], [0], [1], [0, 0, 1, 1], [], []>} : vector<32x64xf32>, vector<64x128xf32>, vector<32x128xf32> -> vector<32x128xf32>
    %c0_3 = arith.constant 0 : index
    %c0_4 = arith.constant 0 : index
    %3 = vector.load %arg3[%c0_3, %c0_4] : memref<1x128xf32, #tpu.memory_space<vmem>>, vector<1x128xf32>
    %4 = vector.broadcast %3 : vector<1x128xf32> to vector<32x128xf32>
    %5 = arith.addf %2, %4 : vector<32x128xf32>
    %c0_5 = arith.constant 0 : index
    %c0_6 = arith.constant 0 : index
    %6 = vector.load %arg4[%c0_5, %c0_6] : memref<32x128xf32, #tpu.memory_space<vmem>>, vector<32x128xf32>
    tpu.vector_store %arg4[%c0_5, %c0_6], %5 {strides = array<i32>} : memref<32x128xf32, #tpu.memory_space<vmem>>, vector<32x128xf32>,
    return
  }
  func.func @transform_0(%arg0: i32) -> (i32, i32) {
    %c0_i32 = arith.constant 0 : i32
    %c0_i32_0 = arith.constant 0 : i32
    return %arg0, %c0_i32 : i32, i32
  }
  func.func @transform_1(%arg0: i32) -> (i32, i32) {
    %c0_i32 = arith.constant 0 : i32
    %c0_i32_0 = arith.constant 0 : i32
    %c0_i32_1 = arith.constant 0 : i32
    return %c0_i32, %c0_i32_0 : i32, i32
  }
  func.func @transform_2(%arg0: i32) -> (i32, i32) {
    %c0_i32 = arith.constant 0 : i32
    %c0_i32_0 = arith.constant 0 : i32
    %c0_i32_1 = arith.constant 0 : i32
    return %c0_i32, %c0_i32_0 : i32, i32
  }
  func.func @transform_3(%arg0: i32) -> (i32, i32) {
    %c0_i32 = arith.constant 0 : i32
    %c0_i32_0 = arith.constant 0 : i32
    return %arg0, %c0_i32 : i32, i32
  }
}

module attributes {stable_mosaic.version = 11 : i64} {
  func.func @_attn_single_kernel(%arg0: i32, %arg1: i32, %arg2: memref<1x16x128xf32, #tpu.memory_space<vmem>>, %arg3: memref<1x16x128xf32, #tpu.memory_space<vmem>>, %arg4: memref<1x16x128xf32, #tpu.memory_space<vmem>>, %arg5: memref<1x4x16x16xi8, #tpu.memory_space<vmem>>, %arg6: memref<1x16x128xf32, #tpu.memory_space<vmem>>) attributes {dimension_semantics = [#tpu.dimension_semantics<parallel>, #tpu.dimension_semantics<parallel>], iteration_bounds = array<i64: 2, 1>, scalar_prefetch = 0 : i64, scratch_operands = 0 : i64, tpu.core_type = #tpu.core_type<tc>, window_params = [{transform_indices = @transform_0, window_bounds = array<i64: 1, 16, 128>}, {transform_indices = @transform_1, window_bounds = array<i64: 1, 16, 128>}, {transform_indices = @transform_2, window_bounds = array<i64: 1, 16, 128>}, {transform_indices = @transform_3, window_bounds = array<i64: 1, 4, 16, 16>}, {transform_indices = @transform_4, window_bounds = array<i64: 1, 16, 128>}]} {
    %c0 = arith.constant 0 : index
    %c0_0 = arith.constant 0 : index
    %c0_1 = arith.constant 0 : index
    %0 = vector.load %arg2[%c0, %c0_0, %c0_1] : memref<1x16x128xf32, #tpu.memory_space<vmem>>, vector<1x16x128xf32>
    %1 = vector.shape_cast %0 : vector<1x16x128xf32> to vector<16x128xf32>
    %c0_2 = arith.constant 0 : index
    %c0_3 = arith.constant 0 : index
    %c0_4 = arith.constant 0 : index
    %2 = vector.load %arg3[%c0_2, %c0_3, %c0_4] : memref<1x16x128xf32, #tpu.memory_space<vmem>>, vector<1x16x128xf32>
    %3 = vector.shape_cast %2 : vector<1x16x128xf32> to vector<16x128xf32>
    %c0_5 = arith.constant 0 : index
    %c0_6 = arith.constant 0 : index
    %c0_7 = arith.constant 0 : index
    %4 = vector.load %arg4[%c0_5, %c0_6, %c0_7] : memref<1x16x128xf32, #tpu.memory_space<vmem>>, vector<1x16x128xf32>
    %5 = vector.shape_cast %4 : vector<1x16x128xf32> to vector<16x128xf32>
    %6 = vector.extract_strided_slice %1 {offsets = [0, 0], sizes = [16, 32], strides = [1, 1]} : vector<16x128xf32> to vector<16x32xf32>
    %7 = vector.extract_strided_slice %3 {offsets = [0, 0], sizes = [16, 32], strides = [1, 1]} : vector<16x128xf32> to vector<16x32xf32>
    %8 = vector.extract_strided_slice %5 {offsets = [0, 0], sizes = [16, 32], strides = [1, 1]} : vector<16x128xf32> to vector<16x32xf32>
    %c0_8 = arith.constant 0 : index
    %c0_9 = arith.constant 0 : index
    %c0_10 = arith.constant 0 : index
    %c0_11 = arith.constant 0 : index
    %9 = vector.load %arg5[%c0_8, %c0_9, %c0_10, %c0_11] : memref<1x4x16x16xi8, #tpu.memory_space<vmem>>, vector<1x1x16x16xi8>
    %10 = vector.shape_cast %9 : vector<1x1x16x16xi8> to vector<16x16xi8>
    %cst = arith.constant dense<0.000000e+00> : vector<16x16xf32>
    %11 = tpu.matmul %6, %7, %cst {dimension_numbers = #tpu.dot_dimension_numbers<[1], [1], [0], [0], [0, 0, 1, 0], [], []>} : vector<16x32xf32>, vector<16x32xf32>, vector<16x16xf32> -> vector<16x16xf32>
    %c0_i8 = arith.constant 0 : i8
    %12 = vector.broadcast %c0_i8 : i8 to vector<16x16xi8>
    %13 = arith.cmpi ne, %10, %12 : vector<16x16xi8>
    %cst_12 = arith.constant 9.99999971E-10 : f32
    %14 = vector.broadcast %cst_12 : f32 to vector<16x16xf32>
    %15 = arith.select %13, %14, %11 : vector<16x16xi1>, vector<16x16xf32>
    %cst_13 = arith.constant dense<0xFF800000> : vector<16xf32>
    %16 = vector.multi_reduction <maximumf>, %15, %cst_13 [1] : vector<16x16xf32> to vector<16xf32>
    %17 = vector.shape_cast %16 : vector<16xf32> to vector<16x1xf32>
    %18 = vector.broadcast %17 : vector<16x1xf32> to vector<16x16xf32>
    %19 = arith.subf %15, %18 : vector<16x16xf32>
    %20 = math.exp %19 : vector<16x16xf32>
    %cst_14 = arith.constant dense<0.000000e+00> : vector<16xf32>
    %21 = vector.multi_reduction <add>, %20, %cst_14 [1] : vector<16x16xf32> to vector<16xf32>
    %22 = vector.shape_cast %21 : vector<16xf32> to vector<16x1xf32>
    %cst_15 = arith.constant dense<0.000000e+00> : vector<16x32xf32>
    %23 = tpu.matmul %20, %8, %cst_15 {dimension_numbers = #tpu.dot_dimension_numbers<[1], [0], [0], [1], [0, 0, 1, 1], [], []>} : vector<16x16xf32>, vector<16x32xf32>, vector<16x32xf32> -> vector<16x32xf32>
    %24 = vector.broadcast %22 : vector<16x1xf32> to vector<16x32xf32>
    %25 = arith.divf %23, %24 : vector<16x32xf32>
    %c0_16 = arith.constant 0 : index
    %c0_17 = arith.constant 0 : index
    %c0_18 = arith.constant 0 : index
    %26 = vector.load %arg6[%c0_16, %c0_17, %c0_18] : memref<1x16x128xf32, #tpu.memory_space<vmem>>, vector<1x16x32xf32>
    %27 = vector.shape_cast %26 : vector<1x16x32xf32> to vector<16x32xf32>
    %28 = vector.shape_cast %25 : vector<16x32xf32> to vector<1x16x32xf32>
    tpu.vector_store %arg6[%c0_16, %c0_17, %c0_18], %28 {strides = array<i32>} : memref<1x16x128xf32, #tpu.memory_space<vmem>>, vector<1x16x32xf32>,
    %29 = vector.extract_strided_slice %1 {offsets = [0, 32], sizes = [16, 32], strides = [1, 1]} : vector<16x128xf32> to vector<16x32xf32>
    %30 = vector.extract_strided_slice %3 {offsets = [0, 32], sizes = [16, 32], strides = [1, 1]} : vector<16x128xf32> to vector<16x32xf32>
    %31 = vector.extract_strided_slice %5 {offsets = [0, 32], sizes = [16, 32], strides = [1, 1]} : vector<16x128xf32> to vector<16x32xf32>
    %c0_19 = arith.constant 0 : index
    %c1 = arith.constant 1 : index
    %c0_20 = arith.constant 0 : index
    %c0_21 = arith.constant 0 : index
    %32 = vector.load %arg5[%c0_19, %c1, %c0_20, %c0_21] : memref<1x4x16x16xi8, #tpu.memory_space<vmem>>, vector<1x1x16x16xi8>
    %33 = vector.shape_cast %32 : vector<1x1x16x16xi8> to vector<16x16xi8>
    %cst_22 = arith.constant dense<0.000000e+00> : vector<16x16xf32>
    %34 = tpu.matmul %29, %30, %cst_22 {dimension_numbers = #tpu.dot_dimension_numbers<[1], [1], [0], [0], [0, 0, 1, 0], [], []>} : vector<16x32xf32>, vector<16x32xf32>, vector<16x16xf32> -> vector<16x16xf32>
    %c0_i8_23 = arith.constant 0 : i8
    %35 = vector.broadcast %c0_i8_23 : i8 to vector<16x16xi8>
    %36 = arith.cmpi ne, %33, %35 : vector<16x16xi8>
    %cst_24 = arith.constant 9.99999971E-10 : f32
    %37 = vector.broadcast %cst_24 : f32 to vector<16x16xf32>
    %38 = arith.select %36, %37, %34 : vector<16x16xi1>, vector<16x16xf32>
    %cst_25 = arith.constant dense<0xFF800000> : vector<16xf32>
    %39 = vector.multi_reduction <maximumf>, %38, %cst_25 [1] : vector<16x16xf32> to vector<16xf32>
    %40 = vector.shape_cast %39 : vector<16xf32> to vector<16x1xf32>
    %41 = vector.broadcast %40 : vector<16x1xf32> to vector<16x16xf32>
    %42 = arith.subf %38, %41 : vector<16x16xf32>
    %43 = math.exp %42 : vector<16x16xf32>
    %cst_26 = arith.constant dense<0.000000e+00> : vector<16xf32>
    %44 = vector.multi_reduction <add>, %43, %cst_26 [1] : vector<16x16xf32> to vector<16xf32>
    %45 = vector.shape_cast %44 : vector<16xf32> to vector<16x1xf32>
    %cst_27 = arith.constant dense<0.000000e+00> : vector<16x32xf32>
    %46 = tpu.matmul %43, %31, %cst_27 {dimension_numbers = #tpu.dot_dimension_numbers<[1], [0], [0], [1], [0, 0, 1, 1], [], []>} : vector<16x16xf32>, vector<16x32xf32>, vector<16x32xf32> -> vector<16x32xf32>
    %47 = vector.broadcast %45 : vector<16x1xf32> to vector<16x32xf32>
    %48 = arith.divf %46, %47 : vector<16x32xf32>
    %c0_28 = arith.constant 0 : index
    %c0_29 = arith.constant 0 : index
    %c32 = arith.constant 32 : index
    %49 = vector.load %arg6[%c0_28, %c0_29, %c32] : memref<1x16x128xf32, #tpu.memory_space<vmem>>, vector<1x16x32xf32>
    %50 = vector.shape_cast %49 : vector<1x16x32xf32> to vector<16x32xf32>
    %51 = vector.shape_cast %48 : vector<16x32xf32> to vector<1x16x32xf32>
    tpu.vector_store %arg6[%c0_28, %c0_29, %c32], %51 {strides = array<i32>} : memref<1x16x128xf32, #tpu.memory_space<vmem>>, vector<1x16x32xf32>,
    %52 = vector.extract_strided_slice %1 {offsets = [0, 64], sizes = [16, 32], strides = [1, 1]} : vector<16x128xf32> to vector<16x32xf32>
    %53 = vector.extract_strided_slice %3 {offsets = [0, 64], sizes = [16, 32], strides = [1, 1]} : vector<16x128xf32> to vector<16x32xf32>
    %54 = vector.extract_strided_slice %5 {offsets = [0, 64], sizes = [16, 32], strides = [1, 1]} : vector<16x128xf32> to vector<16x32xf32>
    %c0_30 = arith.constant 0 : index
    %c2 = arith.constant 2 : index
    %c0_31 = arith.constant 0 : index
    %c0_32 = arith.constant 0 : index
    %55 = vector.load %arg5[%c0_30, %c2, %c0_31, %c0_32] : memref<1x4x16x16xi8, #tpu.memory_space<vmem>>, vector<1x1x16x16xi8>
    %56 = vector.shape_cast %55 : vector<1x1x16x16xi8> to vector<16x16xi8>
    %cst_33 = arith.constant dense<0.000000e+00> : vector<16x16xf32>
    %57 = tpu.matmul %52, %53, %cst_33 {dimension_numbers = #tpu.dot_dimension_numbers<[1], [1], [0], [0], [0, 0, 1, 0], [], []>} : vector<16x32xf32>, vector<16x32xf32>, vector<16x16xf32> -> vector<16x16xf32>
    %c0_i8_34 = arith.constant 0 : i8
    %58 = vector.broadcast %c0_i8_34 : i8 to vector<16x16xi8>
    %59 = arith.cmpi ne, %56, %58 : vector<16x16xi8>
    %cst_35 = arith.constant 9.99999971E-10 : f32
    %60 = vector.broadcast %cst_35 : f32 to vector<16x16xf32>
    %61 = arith.select %59, %60, %57 : vector<16x16xi1>, vector<16x16xf32>
    %cst_36 = arith.constant dense<0xFF800000> : vector<16xf32>
    %62 = vector.multi_reduction <maximumf>, %61, %cst_36 [1] : vector<16x16xf32> to vector<16xf32>
    %63 = vector.shape_cast %62 : vector<16xf32> to vector<16x1xf32>
    %64 = vector.broadcast %63 : vector<16x1xf32> to vector<16x16xf32>
    %65 = arith.subf %61, %64 : vector<16x16xf32>
    %66 = math.exp %65 : vector<16x16xf32>
    %cst_37 = arith.constant dense<0.000000e+00> : vector<16xf32>
    %67 = vector.multi_reduction <add>, %66, %cst_37 [1] : vector<16x16xf32> to vector<16xf32>
    %68 = vector.shape_cast %67 : vector<16xf32> to vector<16x1xf32>
    %cst_38 = arith.constant dense<0.000000e+00> : vector<16x32xf32>
    %69 = tpu.matmul %66, %54, %cst_38 {dimension_numbers = #tpu.dot_dimension_numbers<[1], [0], [0], [1], [0, 0, 1, 1], [], []>} : vector<16x16xf32>, vector<16x32xf32>, vector<16x32xf32> -> vector<16x32xf32>
    %70 = vector.broadcast %68 : vector<16x1xf32> to vector<16x32xf32>
    %71 = arith.divf %69, %70 : vector<16x32xf32>
    %c0_39 = arith.constant 0 : index
    %c0_40 = arith.constant 0 : index
    %c64 = arith.constant 64 : index
    %72 = vector.load %arg6[%c0_39, %c0_40, %c64] : memref<1x16x128xf32, #tpu.memory_space<vmem>>, vector<1x16x32xf32>
    %73 = vector.shape_cast %72 : vector<1x16x32xf32> to vector<16x32xf32>
    %74 = vector.shape_cast %71 : vector<16x32xf32> to vector<1x16x32xf32>
    tpu.vector_store %arg6[%c0_39, %c0_40, %c64], %74 {strides = array<i32>} : memref<1x16x128xf32, #tpu.memory_space<vmem>>, vector<1x16x32xf32>,
    %75 = vector.extract_strided_slice %1 {offsets = [0, 96], sizes = [16, 32], strides = [1, 1]} : vector<16x128xf32> to vector<16x32xf32>
    %76 = vector.extract_strided_slice %3 {offsets = [0, 96], sizes = [16, 32], strides = [1, 1]} : vector<16x128xf32> to vector<16x32xf32>
    %77 = vector.extract_strided_slice %5 {offsets = [0, 96], sizes = [16, 32], strides = [1, 1]} : vector<16x128xf32> to vector<16x32xf32>
    %c0_41 = arith.constant 0 : index
    %c3 = arith.constant 3 : index
    %c0_42 = arith.constant 0 : index
    %c0_43 = arith.constant 0 : index
    %78 = vector.load %arg5[%c0_41, %c3, %c0_42, %c0_43] : memref<1x4x16x16xi8, #tpu.memory_space<vmem>>, vector<1x1x16x16xi8>
    %79 = vector.shape_cast %78 : vector<1x1x16x16xi8> to vector<16x16xi8>
    %cst_44 = arith.constant dense<0.000000e+00> : vector<16x16xf32>
    %80 = tpu.matmul %75, %76, %cst_44 {dimension_numbers = #tpu.dot_dimension_numbers<[1], [1], [0], [0], [0, 0, 1, 0], [], []>} : vector<16x32xf32>, vector<16x32xf32>, vector<16x16xf32> -> vector<16x16xf32>
    %c0_i8_45 = arith.constant 0 : i8
    %81 = vector.broadcast %c0_i8_45 : i8 to vector<16x16xi8>
    %82 = arith.cmpi ne, %79, %81 : vector<16x16xi8>
    %cst_46 = arith.constant 9.99999971E-10 : f32
    %83 = vector.broadcast %cst_46 : f32 to vector<16x16xf32>
    %84 = arith.select %82, %83, %80 : vector<16x16xi1>, vector<16x16xf32>
    %cst_47 = arith.constant dense<0xFF800000> : vector<16xf32>
    %85 = vector.multi_reduction <maximumf>, %84, %cst_47 [1] : vector<16x16xf32> to vector<16xf32>
    %86 = vector.shape_cast %85 : vector<16xf32> to vector<16x1xf32>
    %87 = vector.broadcast %86 : vector<16x1xf32> to vector<16x16xf32>
    %88 = arith.subf %84, %87 : vector<16x16xf32>
    %89 = math.exp %88 : vector<16x16xf32>
    %cst_48 = arith.constant dense<0.000000e+00> : vector<16xf32>
    %90 = vector.multi_reduction <add>, %89, %cst_48 [1] : vector<16x16xf32> to vector<16xf32>
    %91 = vector.shape_cast %90 : vector<16xf32> to vector<16x1xf32>
    %cst_49 = arith.constant dense<0.000000e+00> : vector<16x32xf32>
    %92 = tpu.matmul %89, %77, %cst_49 {dimension_numbers = #tpu.dot_dimension_numbers<[1], [0], [0], [1], [0, 0, 1, 1], [], []>} : vector<16x16xf32>, vector<16x32xf32>, vector<16x32xf32> -> vector<16x32xf32>
    %93 = vector.broadcast %91 : vector<16x1xf32> to vector<16x32xf32>
    %94 = arith.divf %92, %93 : vector<16x32xf32>
    %c0_50 = arith.constant 0 : index
    %c0_51 = arith.constant 0 : index
    %c96 = arith.constant 96 : index
    %95 = vector.load %arg6[%c0_50, %c0_51, %c96] : memref<1x16x128xf32, #tpu.memory_space<vmem>>, vector<1x16x32xf32>
    %96 = vector.shape_cast %95 : vector<1x16x32xf32> to vector<16x32xf32>
    %97 = vector.shape_cast %94 : vector<16x32xf32> to vector<1x16x32xf32>
    tpu.vector_store %arg6[%c0_50, %c0_51, %c96], %97 {strides = array<i32>} : memref<1x16x128xf32, #tpu.memory_space<vmem>>, vector<1x16x32xf32>,
    return
  }
  func.func @transform_0(%arg0: i32, %arg1: i32) -> (i32, i32, i32) {
    %c0_i32 = arith.constant 0 : i32
    %c0_i32_0 = arith.constant 0 : i32
    return %arg0, %arg1, %c0_i32 : i32, i32, i32
  }
  func.func @transform_1(%arg0: i32, %arg1: i32) -> (i32, i32, i32) {
    %c0_i32 = arith.constant 0 : i32
    %c0_i32_0 = arith.constant 0 : i32
    %c0_i32_1 = arith.constant 0 : i32
    return %arg0, %c0_i32, %c0_i32_0 : i32, i32, i32
  }
  func.func @transform_2(%arg0: i32, %arg1: i32) -> (i32, i32, i32) {
    %c0_i32 = arith.constant 0 : i32
    %c0_i32_0 = arith.constant 0 : i32
    %c0_i32_1 = arith.constant 0 : i32
    return %arg0, %c0_i32, %c0_i32_0 : i32, i32, i32
  }
  func.func @transform_3(%arg0: i32, %arg1: i32) -> (i32, i32, i32, i32) {
    %c0_i32 = arith.constant 0 : i32
    %c0_i32_0 = arith.constant 0 : i32
    %c0_i32_1 = arith.constant 0 : i32
    return %arg0, %c0_i32, %arg1, %c0_i32_0 : i32, i32, i32, i32
  }
  func.func @transform_4(%arg0: i32, %arg1: i32) -> (i32, i32, i32) {
    %c0_i32 = arith.constant 0 : i32
    %c0_i32_0 = arith.constant 0 : i32
    return %arg0, %arg1, %c0_i32 : i32, i32, i32
  }
}

module attributes {stable_mosaic.version = 11 : i64} {
  func.func @_linear_simple_kernel(%arg0: i32, %arg1: memref<32x128xf32, #tpu.memory_space<vmem>>, %arg2: memref<128x64xf32, #tpu.memory_space<vmem>>, %arg3: memref<1x64xf32, #tpu.memory_space<vmem>>, %arg4: memref<32x64xf32, #tpu.memory_space<vmem>>) attributes {dimension_semantics = [#tpu.dimension_semantics<parallel>], iteration_bounds = array<i64: 1>, scalar_prefetch = 0 : i64, scratch_operands = 0 : i64, tpu.core_type = #tpu.core_type<tc>, window_params = [{transform_indices = @transform_0, window_bounds = array<i64: 32, 128>}, {pipeline_mode = #tpu.pipeline_mode<synchronous>, transform_indices = @transform_1, window_bounds = array<i64: 128, 64>}, {pipeline_mode = #tpu.pipeline_mode<synchronous>, transform_indices = @transform_2, window_bounds = array<i64: 1, 64>}, {transform_indices = @transform_3, window_bounds = array<i64: 32, 64>}]} {
    %c0 = arith.constant 0 : index
    %c0_0 = arith.constant 0 : index
    %0 = vector.load %arg1[%c0, %c0_0] : memref<32x128xf32, #tpu.memory_space<vmem>>, vector<32x128xf32>
    %c0_1 = arith.constant 0 : index
    %c0_2 = arith.constant 0 : index
    %1 = vector.load %arg2[%c0_1, %c0_2] : memref<128x64xf32, #tpu.memory_space<vmem>>, vector<128x64xf32>
    %cst = arith.constant dense<0.000000e+00> : vector<32x64xf32>
    %2 = tpu.matmul %0, %1, %cst {dimension_numbers = #tpu.dot_dimension_numbers<[1], [0], [0], [1], [0, 0, 1, 1], [], []>} : vector<32x128xf32>, vector<128x64xf32>, vector<32x64xf32> -> vector<32x64xf32>
    %c0_3 = arith.constant 0 : index
    %c0_4 = arith.constant 0 : index
    %3 = vector.load %arg3[%c0_3, %c0_4] : memref<1x64xf32, #tpu.memory_space<vmem>>, vector<1x64xf32>
    %4 = vector.broadcast %3 : vector<1x64xf32> to vector<32x64xf32>
    %5 = arith.addf %2, %4 : vector<32x64xf32>
    %c0_5 = arith.constant 0 : index
    %c0_6 = arith.constant 0 : index
    %6 = vector.load %arg4[%c0_5, %c0_6] : memref<32x64xf32, #tpu.memory_space<vmem>>, vector<32x64xf32>
    tpu.vector_store %arg4[%c0_5, %c0_6], %5 {strides = array<i32>} : memref<32x64xf32, #tpu.memory_space<vmem>>, vector<32x64xf32>,
    return
  }
  func.func @transform_0(%arg0: i32) -> (i32, i32) {
    %c0_i32 = arith.constant 0 : i32
    %c0_i32_0 = arith.constant 0 : i32
    return %arg0, %c0_i32 : i32, i32
  }
  func.func @transform_1(%arg0: i32) -> (i32, i32) {
    %c0_i32 = arith.constant 0 : i32
    %c0_i32_0 = arith.constant 0 : i32
    %c0_i32_1 = arith.constant 0 : i32
    return %c0_i32, %c0_i32_0 : i32, i32
  }
  func.func @transform_2(%arg0: i32) -> (i32, i32) {
    %c0_i32 = arith.constant 0 : i32
    %c0_i32_0 = arith.constant 0 : i32
    %c0_i32_1 = arith.constant 0 : i32
    return %c0_i32, %c0_i32_0 : i32, i32
  }
  func.func @transform_3(%arg0: i32) -> (i32, i32) {
    %c0_i32 = arith.constant 0 : i32
    %c0_i32_0 = arith.constant 0 : i32
    return %arg0, %c0_i32 : i32, i32
  }
}

</mosaic_0001>

<llo_original>
// kernel: multi_head_attention.5
$region0: #{multi_head_attention.5}
  #allocation0 [shape = 'u32[]', space=smem, size = 0x4, offset = 0x4, fixed_abs, tag = 'smem constant byte address 0x4 - core index']
  #allocation1 [shape = 'u32[144,128]{1,0:T(1,128)}', space=vmem, size = 0x12000, scoped, tag = 'internal scratch']
  %s0 = inlined_call_operand.hbm [shape: f32[32,64], index: 0, kind: input, shape index: {}]
  %s1 = inlined_call_operand.vmem [shape: f32[64,128], index: 1, kind: input, shape index: {}]
  %s2 = inlined_call_operand.hbm [shape: f32[1,128], index: 2, kind: input, shape index: {}]
  %s3 = inlined_call_operand.vmem [shape: f32[32,128], index: 3, kind: output, shape index: {}]
  %s4 = sld [smem:[#allocation0]]
  $region30: #{multi_head_attention.5} parent=0
    _
  %s6 = ssub.s32 1, %s4
  %s7 = scalar_select 0, %s6, %s4
  $region1: #{multi_head_attention.5} parent=0
    #allocation2 [shape = 'u8[16384]{0}', space=vmem, size = 0x4000, scoped, tag = 'input window, operand 0, single buffered']
    #allocation3 [shape = 's32[1]{0}', space=sflag, size = 0x4, scoped, tag = 'scoped memory for multi_head_attention.5']
    #allocation4 [shape = 'u8[512]{0}', space=vmem, size = 0x400, scoped, tag = 'input window, operand 2, single buffered']
    #allocation5 [shape = 's32[1]{0}', space=sflag, size = 0x4, scoped, tag = 'scoped memory for multi_head_attention.5']
    %8 = vsyncpa [#allocation3], 0
    %9 = vsyncpa [#allocation5], 0
    // Predicated region
    $region2: #{multi_head_attention.5} parent=1 // pred_check
      _
    $region3: #{multi_head_attention.5} parent=1 // pred_check_branch
      %11 = sbr.rel (0) target = $region5
    $region4: #{multi_head_attention.5} parent=1 // pred_region
      %s13 = ssub.s32 512, 512
      %14 = vsyncadd [#allocation3], %s13
      %s15 = sshll.u32 [#allocation2], 4
      %s16 = int_to_ptr.vmem [resolvable:$true] %s15
      %21 = dma.hbm_to_vmem [thread:$0]  %s0, 512, %s16, [#allocation3], 128, 128, 8
    $region5: #{multi_head_attention.5} parent=1 // pred_fallthru
      _
    // Predicated region
    $region6: #{multi_head_attention.5} parent=1 // pred_check
      _
    $region7: #{multi_head_attention.5} parent=1 // pred_check_branch
      %23 = sbr.rel (0) target = $region9
    $region8: #{multi_head_attention.5} parent=1 // pred_region
      _
    $region9: #{multi_head_attention.5} parent=1 // pred_fallthru
      _
    // Predicated region
    $region10: #{multi_head_attention.5} parent=1 // pred_check
      _
    $region11: #{multi_head_attention.5} parent=1 // pred_check_branch
      %25 = sbr.rel (0) target = $region13
    $region12: #{multi_head_attention.5} parent=1 // pred_region
      %s27 = ssub.s32 16, 16
      %28 = vsyncadd [#allocation5], %s27
      %s30 = sshll.u32 [#allocation4], 4
      %s31 = int_to_ptr.vmem [resolvable:$true] %s30
      %33 = dma.hbm_to_vmem [thread:$0]  %s2, 16, %s31, [#allocation5]
    $region13: #{multi_head_attention.5} parent=1 // pred_fallthru
      _
    // Predicated region
    $region14: #{multi_head_attention.5} parent=1 // pred_check
      _
    $region15: #{multi_head_attention.5} parent=1 // pred_check_branch
      %35 = sbr.rel (0) target = $region17
    $region16: #{multi_head_attention.5} parent=1 // pred_region
      %36 = dma.done [#allocation3], 512
    $region17: #{multi_head_attention.5} parent=1 // pred_fallthru
      _
    // Predicated region
    $region18: #{multi_head_attention.5} parent=1 // pred_check
      _
    $region19: #{multi_head_attention.5} parent=1 // pred_check_branch
      %38 = sbr.rel (0) target = $region21
    $region20: #{multi_head_attention.5} parent=1 // pred_region
      %39 = dma.done [#allocation5], 16
    $region21: #{multi_head_attention.5} parent=1 // pred_fallthru
      _
    %v40 = vld [vmem:[#allocation2] sm:$0xff]
    %v41 = vld [vmem:[#allocation2 + $0x8] sm:$0xff]
    %v42 = vld [vmem:[#allocation2 + $0x10] sm:$0xff]
    %v43 = vld [vmem:[#allocation2 + $0x18] sm:$0xff]
    %v44 = vld [vmem:[%s1] sm:$0xff]
    %v45 = vld [vmem:[%s1 + $0x8] sm:$0xff]
    %v46 = vld [vmem:[%s1 + $0x10] sm:$0xff]
    %v47 = vld [vmem:[%s1 + $0x18] sm:$0xff]
    %v48 = vld [vmem:[%s1 + $0x20] sm:$0xff]
    %v49 = vld [vmem:[%s1 + $0x28] sm:$0xff]
    %v50 = vld [vmem:[%s1 + $0x30] sm:$0xff]
    %v51 = vld [vmem:[%s1 + $0x38] sm:$0xff]
    %v52 = vld [vmem:[#allocation4] sm:$0x1]
    %v54 = vlaneseq
    %v55 = vshrl.u32 %v54, 7
    %v56 = vsub.s32 0, %v55
    %v57 = vrot.slane %v52, %v56
    %vm59 = vcmask 523264
    %v61 = vsel %vm59, %v40, 0
    %v64 = vsel %vm59, %v41, 0
    %v67 = vsel %vm59, %v42, 0
    %v70 = vsel %vm59, %v43, 0
    %72 = vmatprep.subr.mxu0 0.0
    %73 = vmatpush1.msra.mxu0 %v44
    %74 = vmatprep.subr.mxu0 0.0
    %75 = vmatpush1.msra.mxu0 %v45
    %76 = vmatprep.subr.mxu0 0.0
    %77 = vmatpush1.msra.mxu0 %v46
    %78 = vmatprep.subr.mxu0 0.0
    %79 = vmatpush1.msra.mxu0 %v47
    %80 = vmatprep.subr.mxu0 0.0
    %81 = vmatpush1.msra.mxu0 %v48
    %82 = vmatprep.subr.mxu0 0.0
    %83 = vmatpush1.msra.mxu0 %v49
    %84 = vmatprep.subr.mxu0 0.0
    %85 = vmatpush1.msra.mxu0 %v50
    %86 = vmatprep.subr.mxu0 0.0
    %87 = vmatpush1.msra.mxu0 %v51
    %88 = vmatprep.subr.mxu0 0.0
    %89 = vmatpush1.msra.mxu0 0.0
    %90 = vmatprep.subr.mxu0 0.0
    %91 = vmatpush1.msra.mxu0 0.0
    %92 = vmatprep.subr.mxu0 0.0
    %93 = vmatpush1.msra.mxu0 0.0
    %94 = vmatprep.subr.mxu0 0.0
    %95 = vmatpush1.msra.mxu0 0.0
    %96 = vmatprep.subr.mxu0 0.0
    %97 = vmatpush1.msra.mxu0 0.0
    %98 = vmatprep.subr.mxu0 0.0
    %99 = vmatpush1.msra.mxu0 0.0
    %100 = vmatprep.subr.mxu0 0.0
    %101 = vmatpush1.msra.mxu0 0.0
    %102 = vmatprep.subr.mxu0 0.0
    %103 = vmatpush1.msra.mxu0 0.0
    %104 = vmatprep.subr.mxu0 0.0
    %105 = vmatpush1.msra.mxu0 0.0
    %106 = vmatprep.subr.mxu0 0.0
    %107 = vmatpush1.msra.mxu0 0.0
    %108 = vmatprep.subr.mxu0 0.0
    %109 = vmatpush1.msra.mxu0 0.0
    %110 = vmatprep.subr.mxu0 0.0
    %111 = vmatpush1.msra.mxu0 0.0
    %112 = vmatprep.subr.mxu0 0.0
    %113 = vmatpush1.msra.mxu0 0.0
    %114 = vmatprep.subr.mxu0 0.0
    %115 = vmatpush1.msra.mxu0 0.0
    %116 = vmatprep.subr.mxu0 0.0
    %117 = vmatpush1.msra.mxu0 0.0
    %118 = vmatprep.subr.mxu0 0.0
    %119 = vmatpush1.msra.mxu0 0.0
    %120 = vmatprep.subr.mxu0 0.0
    %121 = vmatpush1.msra.mxu0 0.0
    %122 = vmatprep.subr.mxu0 0.0
    %123 = vmatpush1.msra.mxu0 0.0
    %124 = vmatprep.subr.mxu0 0.0
    %125 = vmatpush1.msra.mxu0 0.0
    %126 = vmatprep.subr.mxu0 0.0
    %127 = vmatpush1.msra.mxu0 0.0
    %128 = vmatprep.subr.mxu0 0.0
    %129 = vmatpush1.msra.mxu0 0.0
    %130 = vmatprep.subr.mxu0 0.0
    %131 = vmatpush1.msra.mxu0 0.0
    %132 = vmatprep.subr.mxu0 0.0
    %133 = vmatpush1.msra.mxu0 0.0
    %134 = vmatprep.subr.mxu0 0.0
    %135 = vmatpush1.msra.mxu0 0.0
    %136 = vmatprep.mubr.f32.mxu0 0.0
    %137 = vmatmul.mubr.f32.gmra.mrb[0].mxu0 %v61
    %v138 = vpop.f32.mrb[0].mxu0
    %v139 = vadd.f32 %v57, %v138
    %v140 = vpop.f32.mrb[0].mxu0
    %141 = vmatprep.mubr.f32.mxu0 0.0
    %142 = vmatmul.mubr.f32.gmra.mrb[0].mxu0 %v64
    %v143 = vpop.f32.mrb[0].mxu0
    %v144 = vadd.f32 %v57, %v143
    %v145 = vpop.f32.mrb[0].mxu0
    %146 = vmatprep.mubr.f32.mxu0 0.0
    %147 = vmatmul.mubr.f32.gmra.mrb[0].mxu0 %v67
    %v148 = vpop.f32.mrb[0].mxu0
    %v149 = vadd.f32 %v57, %v148
    %v150 = vpop.f32.mrb[0].mxu0
    %151 = vmatprep.mubr.f32.mxu0 0.0
    %152 = vmatmul.mubr.f32.gmra.mrb[0].mxu0 %v70
    %v153 = vpop.f32.mrb[0].mxu0
    %v154 = vadd.f32 %v57, %v153
    %v155 = vpop.f32.mrb[0].mxu0
    %156 = vdwg.mxu0
    %157 = vst [vmem:[%s3] sm:$0xff] %v139
    %158 = vst [vmem:[%s3 + $0x8] sm:$0xff] %v144
    %159 = vst [vmem:[%s3 + $0x10] sm:$0xff] %v149
    %160 = vst [vmem:[%s3 + $0x18] sm:$0xff] %v154
    // Predicated region
    $region22: #{multi_head_attention.5} parent=1 // pred_check
      _
    $region23: #{multi_head_attention.5} parent=1 // pred_check_branch
      %162 = sbr.rel (0) target = $region25
    $region24: #{multi_head_attention.5} parent=1 // pred_region
      _
    $region25: #{multi_head_attention.5} parent=1 // pred_fallthru
      _
    // Predicated region
    $region26: #{multi_head_attention.5} parent=1 // pred_check
      _
    $region27: #{multi_head_attention.5} parent=1 // pred_check_branch
      %164 = sbr.rel (0) target = $region29
    $region28: #{multi_head_attention.5} parent=1 // pred_region
      _
    $region29: #{multi_head_attention.5} parent=1 // pred_fallthru
      _
    %165 = vsyncpa [#allocation3], 1
    %166 = vsyncpa [#allocation5], 1

// kernel: multi_head_attention.6
$region0: #{multi_head_attention.6}
  #allocation0 [shape = 'u32[]', space=smem, size = 0x4, offset = 0x4, fixed_abs, tag = 'smem constant byte address 0x4 - core index']
  #allocation1 [shape = 'u32[144,128]{1,0:T(1,128)}', space=vmem, size = 0x12000, scoped, tag = 'internal scratch']
  %s0 = inlined_call_operand.vmem [shape: f32[32,64], index: 0, kind: input, shape index: {}]
  %s1 = inlined_call_operand.vmem [shape: f32[64,128], index: 1, kind: input, shape index: {}]
  %s2 = inlined_call_operand.vmem [shape: f32[1,128], index: 2, kind: input, shape index: {}]
  %s3 = inlined_call_operand.vmem [shape: f32[32,128], index: 3, kind: output, shape index: {}]
  %s4 = sld [smem:[#allocation0]]
  $region22: #{multi_head_attention.6} parent=0
    _
  %s6 = ssub.s32 1, %s4
  %s7 = scalar_select 0, %s6, %s4
  // Predicated region
  $region2: #{multi_head_attention.6} parent=0 // pred_check
    _
  $region3: #{multi_head_attention.6} parent=0 // pred_check_branch
    %9 = sbr.rel (0) target = $region5
  $region4: #{multi_head_attention.6} parent=0 // pred_region
    _
  $region5: #{multi_head_attention.6} parent=0 // pred_fallthru
    _
  // Predicated region
  $region6: #{multi_head_attention.6} parent=0 // pred_check
    _
  $region7: #{multi_head_attention.6} parent=0 // pred_check_branch
    %11 = sbr.rel (0) target = $region9
  $region8: #{multi_head_attention.6} parent=0 // pred_region
    _
  $region9: #{multi_head_attention.6} parent=0 // pred_fallthru
    _
  // Predicated region
  $region10: #{multi_head_attention.6} parent=0 // pred_check
    _
  $region11: #{multi_head_attention.6} parent=0 // pred_check_branch
    %13 = sbr.rel (0) target = $region13
  $region12: #{multi_head_attention.6} parent=0 // pred_region
    _
  $region13: #{multi_head_attention.6} parent=0 // pred_fallthru
    _
  %v14 = vld [vmem:[%s0] sm:$0xff]
  %v15 = vld [vmem:[%s0 + $0x8] sm:$0xff]
  %v16 = vld [vmem:[%s0 + $0x10] sm:$0xff]
  %v17 = vld [vmem:[%s0 + $0x18] sm:$0xff]
  %v18 = vld [vmem:[%s1] sm:$0xff]
  %v19 = vld [vmem:[%s1 + $0x8] sm:$0xff]
  %v20 = vld [vmem:[%s1 + $0x10] sm:$0xff]
  %v21 = vld [vmem:[%s1 + $0x18] sm:$0xff]
  %v22 = vld [vmem:[%s1 + $0x20] sm:$0xff]
  %v23 = vld [vmem:[%s1 + $0x28] sm:$0xff]
  %v24 = vld [vmem:[%s1 + $0x30] sm:$0xff]
  %v25 = vld [vmem:[%s1 + $0x38] sm:$0xff]
  %v26 = vld [vmem:[%s2] sm:$0x1]
  %v28 = vlaneseq
  %v29 = vshrl.u32 %v28, 7
  %v30 = vsub.s32 0, %v29
  %v31 = vrot.slane %v26, %v30
  %vm33 = vcmask 523264
  %v35 = vsel %vm33, %v14, 0
  %v38 = vsel %vm33, %v15, 0
  %v41 = vsel %vm33, %v16, 0
  %v44 = vsel %vm33, %v17, 0
  %46 = vmatprep.subr.mxu0 0.0
  %47 = vmatpush1.msra.mxu0 %v18
  %48 = vmatprep.subr.mxu0 0.0
  %49 = vmatpush1.msra.mxu0 %v19
  %50 = vmatprep.subr.mxu0 0.0
  %51 = vmatpush1.msra.mxu0 %v20
  %52 = vmatprep.subr.mxu0 0.0
  %53 = vmatpush1.msra.mxu0 %v21
  %54 = vmatprep.subr.mxu0 0.0
  %55 = vmatpush1.msra.mxu0 %v22
  %56 = vmatprep.subr.mxu0 0.0
  %57 = vmatpush1.msra.mxu0 %v23
  %58 = vmatprep.subr.mxu0 0.0
  %59 = vmatpush1.msra.mxu0 %v24
  %60 = vmatprep.subr.mxu0 0.0
  %61 = vmatpush1.msra.mxu0 %v25
  %62 = vmatprep.subr.mxu0 0.0
  %63 = vmatpush1.msra.mxu0 0.0
  %64 = vmatprep.subr.mxu0 0.0
  %65 = vmatpush1.msra.mxu0 0.0
  %66 = vmatprep.subr.mxu0 0.0
  %67 = vmatpush1.msra.mxu0 0.0
  %68 = vmatprep.subr.mxu0 0.0
  %69 = vmatpush1.msra.mxu0 0.0
  %70 = vmatprep.subr.mxu0 0.0
  %71 = vmatpush1.msra.mxu0 0.0
  %72 = vmatprep.subr.mxu0 0.0
  %73 = vmatpush1.msra.mxu0 0.0
  %74 = vmatprep.subr.mxu0 0.0
  %75 = vmatpush1.msra.mxu0 0.0
  %76 = vmatprep.subr.mxu0 0.0
  %77 = vmatpush1.msra.mxu0 0.0
  %78 = vmatprep.subr.mxu0 0.0
  %79 = vmatpush1.msra.mxu0 0.0
  %80 = vmatprep.subr.mxu0 0.0
  %81 = vmatpush1.msra.mxu0 0.0
  %82 = vmatprep.subr.mxu0 0.0
  %83 = vmatpush1.msra.mxu0 0.0
  %84 = vmatprep.subr.mxu0 0.0
  %85 = vmatpush1.msra.mxu0 0.0
  %86 = vmatprep.subr.mxu0 0.0
  %87 = vmatpush1.msra.mxu0 0.0
  %88 = vmatprep.subr.mxu0 0.0
  %89 = vmatpush1.msra.mxu0 0.0
  %90 = vmatprep.subr.mxu0 0.0
  %91 = vmatpush1.msra.mxu0 0.0
  %92 = vmatprep.subr.mxu0 0.0
  %93 = vmatpush1.msra.mxu0 0.0
  %94 = vmatprep.subr.mxu0 0.0
  %95 = vmatpush1.msra.mxu0 0.0
  %96 = vmatprep.subr.mxu0 0.0
  %97 = vmatpush1.msra.mxu0 0.0
  %98 = vmatprep.subr.mxu0 0.0
  %99 = vmatpush1.msra.mxu0 0.0
  %100 = vmatprep.subr.mxu0 0.0
  %101 = vmatpush1.msra.mxu0 0.0
  %102 = vmatprep.subr.mxu0 0.0
  %103 = vmatpush1.msra.mxu0 0.0
  %104 = vmatprep.subr.mxu0 0.0
  %105 = vmatpush1.msra.mxu0 0.0
  %106 = vmatprep.subr.mxu0 0.0
  %107 = vmatpush1.msra.mxu0 0.0
  %108 = vmatprep.subr.mxu0 0.0
  %109 = vmatpush1.msra.mxu0 0.0
  %110 = vmatprep.mubr.f32.mxu0 0.0
  %111 = vmatmul.mubr.f32.gmra.mrb[0].mxu0 %v35
  %v112 = vpop.f32.mrb[0].mxu0
  %v113 = vadd.f32 %v31, %v112
  %v114 = vpop.f32.mrb[0].mxu0
  %115 = vmatprep.mubr.f32.mxu0 0.0
  %116 = vmatmul.mubr.f32.gmra.mrb[0].mxu0 %v38
  %v117 = vpop.f32.mrb[0].mxu0
  %v118 = vadd.f32 %v31, %v117
  %v119 = vpop.f32.mrb[0].mxu0
  %120 = vmatprep.mubr.f32.mxu0 0.0
  %121 = vmatmul.mubr.f32.gmra.mrb[0].mxu0 %v41
  %v122 = vpop.f32.mrb[0].mxu0
  %v123 = vadd.f32 %v31, %v122
  %v124 = vpop.f32.mrb[0].mxu0
  %125 = vmatprep.mubr.f32.mxu0 0.0
  %126 = vmatmul.mubr.f32.gmra.mrb[0].mxu0 %v44
  %v127 = vpop.f32.mrb[0].mxu0
  %v128 = vadd.f32 %v31, %v127
  %v129 = vpop.f32.mrb[0].mxu0
  %130 = vdwg.mxu0
  %131 = vst [vmem:[%s3] sm:$0xff] %v113
  %132 = vst [vmem:[%s3 + $0x8] sm:$0xff] %v118
  %133 = vst [vmem:[%s3 + $0x10] sm:$0xff] %v123
  %134 = vst [vmem:[%s3 + $0x18] sm:$0xff] %v128
  // Predicated region
  $region14: #{multi_head_attention.6} parent=0 // pred_check
    _
  $region15: #{multi_head_attention.6} parent=0 // pred_check_branch
    %136 = sbr.rel (0) target = $region17
  $region16: #{multi_head_attention.6} parent=0 // pred_region
    _
  $region17: #{multi_head_attention.6} parent=0 // pred_fallthru
    _
  // Predicated region
  $region18: #{multi_head_attention.6} parent=0 // pred_check
    _
  $region19: #{multi_head_attention.6} parent=0 // pred_check_branch
    %138 = sbr.rel (0) target = $region21
  $region20: #{multi_head_attention.6} parent=0 // pred_region
    _
  $region21: #{multi_head_attention.6} parent=0 // pred_fallthru
    _

// kernel: multi_head_attention.8
$region0: #{multi_head_attention.8}
  #allocation0 [shape = 'u32[]', space=smem, size = 0x4, offset = 0x4, fixed_abs, tag = 'smem constant byte address 0x4 - core index']
  #allocation1 [shape = 'u32[144,128]{1,0:T(1,128)}', space=vmem, size = 0x12000, scoped, tag = 'internal scratch']
  %s0 = inlined_call_operand.vmem [shape: f32[2,16,128], index: 0, kind: input, shape index: {}]
  %s1 = inlined_call_operand.vmem [shape: f32[2,16,128], index: 1, kind: input, shape index: {}]
  %s2 = inlined_call_operand.vmem [shape: f32[2,16,128], index: 2, kind: input, shape index: {}]
  %s3 = inlined_call_operand.vmem [shape: s8[2,4,16,16], index: 3, kind: input, shape index: {}]
  %s4 = inlined_call_operand.vmem [shape: f32[2,16,128], index: 4, kind: output, shape index: {}]
  %s5 = sld [smem:[#allocation0]]
  $region49: #{multi_head_attention.8} parent=0
    _
  %s7 = ssub.s32 1, %s5
  %s8 = scalar_select 0, %s7, %s5
  loop: start=0, step=1, limit=4
  $region2: #{multi_head_attention.8} parent=0 // loop_pre_header
    _
  $region3: #{multi_head_attention.8} parent=0 // loop_header
    %s10 = sphi 0, %s14
    %p11 = scmp.ge.s32.totalorder %s10, 4
    %s17 = sphi 0, %s29
    %s18 = sphi 0, %s25
    %s19 = sphi 0, %s17
    %s20 = sphi 0, %s18
    %s21 = sphi 0, %s19
    %s22 = sphi 0, %s20
    %s34 = sphi 0, %s36
    %s37 = sphi 0, %s34
    %s38 = sphi 0, %s37
    %s54 = sphi 0, %s38
    %s60 = sphi 0, %s62
    %s63 = sphi 0, %s60
    %s64 = sphi 0, %s63
    %s80 = sphi 0, %s64
    %s86 = sphi 0, %s88
    %s89 = sphi 0, %s86
    %s90 = sphi 0, %s89
    %s106 = sphi 0, %s90
    %s114 = sphi 0, %s116
    %s117 = sphi 0, %s114
    %s118 = sphi 0, %s117
    %s134 = sphi 0, %s118
    %s142 = sphi 0, %s144
    %s145 = sphi 0, %s142
    %s146 = sphi 0, %s145
    %s162 = sphi 0, %s146
  $region4: #{multi_head_attention.8} parent=0 // loop_header_branch
    %13 = sbr.rel (%p11) target = $region8
  $region5: #{multi_head_attention.8} parent=0 // loop_body
    %s15 = ssub.s32 %s10, 1
    %s16 = ssub.s32 %s10, 2
    %s23 = sadd.s32 1, %s18
    %p24 = scmp.ge.s32.totalorder %s23, 1
    %s25 = scalar_select %p24, 0, %s23
    %s26 = sadd.s32 1, %s17
    %s27 = scalar_select %p24, %s26, %s17
    %p28 = scmp.ge.s32.totalorder %s27, 2
    %s29 = scalar_select %p28, 0, %s27
    %s30 = ssub.s32 %s17, %s29
    %s31 = ssub.s32 %s18, %s25
    %s32 = sor.u32 %s30, %s31
    %p33 = scmp.eq.s32.totalorder %s32, 0
    %s35 = sadd.s32 %s34, 1
    %s36 = scalar_select %p33, %s34, %s35
    %p39 = pneg %p33
    %p40 = scmp.eq.s32.totalorder %s10, 1
    %p41 = por %p39, %p40
    %p42 = scmp.ne.s32.totalorder %s34, %s37
    %p43 = scmp.eq.s32.totalorder %s10, 0
    %p44 = por %p42, %p43
    %p45 = scmp.ne.s32.totalorder %s34, %s37
    %p46 = scmp.eq.s32.totalorder %s15, 1
    %p47 = por %p45, %p46
    %p48 = scmp.ne.s32.totalorder %s37, %s38
    %p49 = scmp.eq.s32.totalorder %s15, 0
    %p50 = por %p48, %p49
    %p51 = scmp.ne.s32.totalorder %s37, %s38
    %p52 = scmp.eq.s32.totalorder %s16, 1
    %p53 = por %p51, %p52
    %p55 = scmp.ne.s32.totalorder %s38, %s54
    %p56 = scmp.eq.s32.totalorder %s16, 0
    %p57 = por %p55, %p56
    %s58 = ssub.s32 %s17, %s29
    %p59 = scmp.eq.s32.totalorder %s58, 0
    %s61 = sadd.s32 %s60, 1
    %s62 = scalar_select %p59, %s60, %s61
    %p65 = pneg %p59
    %p66 = scmp.eq.s32.totalorder %s10, 1
    %p67 = por %p65, %p66
    %p68 = scmp.ne.s32.totalorder %s60, %s63
    %p69 = scmp.eq.s32.totalorder %s10, 0
    %p70 = por %p68, %p69
    %p71 = scmp.ne.s32.totalorder %s60, %s63
    %p72 = scmp.eq.s32.totalorder %s15, 1
    %p73 = por %p71, %p72
    %p74 = scmp.ne.s32.totalorder %s63, %s64
    %p75 = scmp.eq.s32.totalorder %s15, 0
    %p76 = por %p74, %p75
    %p77 = scmp.ne.s32.totalorder %s63, %s64
    %p78 = scmp.eq.s32.totalorder %s16, 1
    %p79 = por %p77, %p78
    %p81 = scmp.ne.s32.totalorder %s64, %s80
    %p82 = scmp.eq.s32.totalorder %s16, 0
    %p83 = por %p81, %p82
    %s84 = ssub.s32 %s17, %s29
    %p85 = scmp.eq.s32.totalorder %s84, 0
    %s87 = sadd.s32 %s86, 1
    %s88 = scalar_select %p85, %s86, %s87
    %p91 = pneg %p85
    %p92 = scmp.eq.s32.totalorder %s10, 1
    %p93 = por %p91, %p92
    %p94 = scmp.ne.s32.totalorder %s86, %s89
    %p95 = scmp.eq.s32.totalorder %s10, 0
    %p96 = por %p94, %p95
    %p97 = scmp.ne.s32.totalorder %s86, %s89
    %p98 = scmp.eq.s32.totalorder %s15, 1
    %p99 = por %p97, %p98
    %p100 = scmp.ne.s32.totalorder %s89, %s90
    %p101 = scmp.eq.s32.totalorder %s15, 0
    %p102 = por %p100, %p101
    %p103 = scmp.ne.s32.totalorder %s89, %s90
    %p104 = scmp.eq.s32.totalorder %s16, 1
    %p105 = por %p103, %p104
    %p107 = scmp.ne.s32.totalorder %s90, %s106
    %p108 = scmp.eq.s32.totalorder %s16, 0
    %p109 = por %p107, %p108
    %s110 = ssub.s32 %s17, %s29
    %s111 = ssub.s32 %s18, %s25
    %s112 = sor.u32 %s110, %s111
    %p113 = scmp.eq.s32.totalorder %s112, 0
    %s115 = sadd.s32 %s114, 1
    %s116 = scalar_select %p113, %s114, %s115
    %p119 = pneg %p113
    %p120 = scmp.eq.s32.totalorder %s10, 1
    %p121 = por %p119, %p120
    %p122 = scmp.ne.s32.totalorder %s114, %s117
    %p123 = scmp.eq.s32.totalorder %s10, 0
    %p124 = por %p122, %p123
    %p125 = scmp.ne.s32.totalorder %s114, %s117
    %p126 = scmp.eq.s32.totalorder %s15, 1
    %p127 = por %p125, %p126
    %p128 = scmp.ne.s32.totalorder %s117, %s118
    %p129 = scmp.eq.s32.totalorder %s15, 0
    %p130 = por %p128, %p129
    %p131 = scmp.ne.s32.totalorder %s117, %s118
    %p132 = scmp.eq.s32.totalorder %s16, 1
    %p133 = por %p131, %p132
    %p135 = scmp.ne.s32.totalorder %s118, %s134
    %p136 = scmp.eq.s32.totalorder %s16, 0
    %p137 = por %p135, %p136
    %s138 = ssub.s32 %s17, %s29
    %s139 = ssub.s32 %s18, %s25
    %s140 = sor.u32 %s138, %s139
    %p141 = scmp.eq.s32.totalorder %s140, 0
    %s143 = sadd.s32 %s142, 1
    %s144 = scalar_select %p141, %s142, %s143
    %p147 = pneg %p141
    %p148 = scmp.eq.s32.totalorder %s10, 1
    %p149 = por %p147, %p148
    %p150 = scmp.ne.s32.totalorder %s142, %s145
    %p151 = scmp.eq.s32.totalorder %s10, 0
    %p152 = por %p150, %p151
    %p153 = scmp.ne.s32.totalorder %s142, %s145
    %p154 = scmp.eq.s32.totalorder %s15, 1
    %p155 = por %p153, %p154
    %p156 = scmp.ne.s32.totalorder %s145, %s146
    %p157 = scmp.eq.s32.totalorder %s15, 0
    %p158 = por %p156, %p157
    %p159 = scmp.ne.s32.totalorder %s145, %s146
    %p160 = scmp.eq.s32.totalorder %s16, 1
    %p161 = por %p159, %p160
    %p163 = scmp.ne.s32.totalorder %s146, %s162
    %p164 = scmp.eq.s32.totalorder %s16, 0
    %p165 = por %p163, %p164
    %p166 = scmp.le.s32.totalorder 1, %s10
    %p167 = scmp.lt.s32.totalorder %s10, 3
    %p168 = pnand %p166, %p167
    %p169 = pneg %p168
    // Predicated region
    $region9: #{multi_head_attention.8} parent=5 // pred_check
      _
    $region10: #{multi_head_attention.8} parent=5 // pred_check_branch
      %171 = sbr.rel (%p168) target = $region12
    $region11: #{multi_head_attention.8} parent=5 // pred_region
      %s172 = ssub.s32 %s10, 1
    $region12: #{multi_head_attention.8} parent=5 // pred_fallthru
      _
    %p173 = scmp.lt.s32.totalorder %s10, 2
    // Predicated region
    $region13: #{multi_head_attention.8} parent=5 // pred_check
      %p174 = pneg %p173
    $region14: #{multi_head_attention.8} parent=5 // pred_check_branch
      %176 = sbr.rel (%p174) target = $region16
    $region15: #{multi_head_attention.8} parent=5 // pred_region
      // Predicated region
      $region17: #{multi_head_attention.8} parent=15 // pred_check
        %p177 = pneg %p44
      $region18: #{multi_head_attention.8} parent=15 // pred_check_branch
        %179 = sbr.rel (%p177) target = $region20
      $region19: #{multi_head_attention.8} parent=15 // pred_region
        %s180 = smul.u32 2, %s18
        %p181 = scmp.lt.s32.totalorder %s17, 1
        %s182 = scalar_select %p181, %s17, 1
        %p183 = scmp.lt.s32.totalorder %s180, 1
        %s184 = scalar_select %p183, %s180, 1
        %s185 = smul.addr %s182, 2
        %s186 = sadd.s32 %s184, %s185
        %s187 = smul.addr %s186, 8
        %s188 = scalar_lea.vmem %s0, %s187
        %s189 = smul.u32 2, %s18
      $region20: #{multi_head_attention.8} parent=15 // pred_fallthru
        _
      // Predicated region
      $region21: #{multi_head_attention.8} parent=15 // pred_check
        %p190 = pneg %p70
      $region22: #{multi_head_attention.8} parent=15 // pred_check_branch
        %192 = sbr.rel (%p190) target = $region24
      $region23: #{multi_head_attention.8} parent=15 // pred_region
        %p193 = scmp.lt.s32.totalorder %s17, 1
        %s194 = scalar_select %p193, %s17, 1
        %s195 = smul.addr %s194, 2
        %s196 = smul.addr %s195, 8
        %s197 = scalar_lea.vmem %s1, %s196
      $region24: #{multi_head_attention.8} parent=15 // pred_fallthru
        _
      // Predicated region
      $region25: #{multi_head_attention.8} parent=15 // pred_check
        %p198 = pneg %p96
      $region26: #{multi_head_attention.8} parent=15 // pred_check_branch
        %200 = sbr.rel (%p198) target = $region28
      $region27: #{multi_head_attention.8} parent=15 // pred_region
        %p201 = scmp.lt.s32.totalorder %s17, 1
        %s202 = scalar_select %p201, %s17, 1
        %s203 = smul.addr %s202, 2
        %s204 = smul.addr %s203, 8
        %s205 = scalar_lea.vmem %s2, %s204
      $region28: #{multi_head_attention.8} parent=15 // pred_fallthru
        _
      // Predicated region
      $region29: #{multi_head_attention.8} parent=15 // pred_check
        %p206 = pneg %p124
      $region30: #{multi_head_attention.8} parent=15 // pred_check_branch
        %208 = sbr.rel (%p206) target = $region32
      $region31: #{multi_head_attention.8} parent=15 // pred_region
        %s209 = smul.u32 2, %s18
        %p210 = scmp.lt.s32.totalorder %s17, 1
        %s211 = scalar_select %p210, %s17, 1
        %p212 = scmp.lt.s32.totalorder %s209, 1
        %s213 = scalar_select %p212, %s209, 1
        %s214 = smul.addr %s211, 8
        %s215 = sadd.s32 %s213, %s214
        %s216 = smul.addr %s215, 2
        %s217 = scalar_lea.vmem %s3, %s216
        %s218 = smul.u32 2, %s18
      $region32: #{multi_head_attention.8} parent=15 // pred_fallthru
        _
    $region16: #{multi_head_attention.8} parent=5 // pred_fallthru
      _
    %p219 = scmp.le.s32.totalorder 1, %s10
    %p220 = scmp.lt.s32.totalorder %s10, 3
    %p221 = pnand %p219, %p220
    %p222 = pneg %p221
    // Predicated region
    $region33: #{multi_head_attention.8} parent=5 // pred_check
      _
    $region34: #{multi_head_attention.8} parent=5 // pred_check_branch
      %224 = sbr.rel (%p221) target = $region36
    $region35: #{multi_head_attention.8} parent=5 // pred_region
      %s225 = ssub.s32 %s10, 1
      %s226 = smul.u32 2, %s20
      %p227 = scmp.lt.s32.totalorder %s19, 1
      %s228 = scalar_select %p227, %s19, 1
      %p229 = scmp.lt.s32.totalorder %s226, 1
      %s230 = scalar_select %p229, %s226, 1
      %s231 = smul.addr %s228, 2
      %s232 = sadd.s32 %s230, %s231
      %s233 = smul.addr %s232, 8
      %s234 = scalar_lea.vmem %s0, %s233
      %p235 = pneg %p50
      %p236 = pneg %p47
      %p237 = scmp.lt.s32.totalorder %s19, 1
      %s238 = scalar_select %p237, %s19, 1
      %s239 = smul.addr %s238, 2
      %s240 = smul.addr %s239, 8
      %s241 = scalar_lea.vmem %s1, %s240
      %p242 = pneg %p76
      %p243 = pneg %p73
      %p244 = scmp.lt.s32.totalorder %s19, 1
      %s245 = scalar_select %p244, %s19, 1
      %s246 = smul.addr %s245, 2
      %s247 = smul.addr %s246, 8
      %s248 = scalar_lea.vmem %s2, %s247
      %p249 = pneg %p102
      %p250 = pneg %p99
      %s251 = smul.u32 2, %s20
      %p252 = scmp.lt.s32.totalorder %s19, 1
      %s253 = scalar_select %p252, %s19, 1
      %p254 = scmp.lt.s32.totalorder %s251, 1
      %s255 = scalar_select %p254, %s251, 1
      %s256 = smul.addr %s253, 8
      %s257 = sadd.s32 %s255, %s256
      %s258 = smul.addr %s257, 2
      %s259 = scalar_lea.vmem %s3, %s258
      %p260 = pneg %p130
      %p261 = pneg %p127
      %p262 = pneg %p158
      %p263 = pneg %p155
      %s264 = smul.u32 2, %s20
      %p265 = scmp.lt.s32.totalorder %s19, 1
      %s266 = scalar_select %p265, %s19, 1
      %p267 = scmp.lt.s32.totalorder %s264, 1
      %s268 = scalar_select %p267, %s264, 1
      %s269 = smul.addr %s266, 2
      %s270 = sadd.s32 %s268, %s269
      %s271 = smul.addr %s270, 8
      %s272 = scalar_lea.vmem %s4, %s271
      %s273 = smul.u32 2, %s20
      %p274 = scmp.lt.s32.totalorder %s19, 1
      %s275 = scalar_select %p274, %s19, 1
      %p276 = scmp.lt.s32.totalorder %s273, 1
      %s277 = scalar_select %p276, %s273, 1
      %s278 = smul.addr %s275, 2
      %s279 = sadd.s32 %s277, %s278
      %s280 = smul.addr %s279, 8
      %s281 = scalar_lea.vmem %s0, %s280
      %s282 = smul.u32 2, %s20
      %p283 = scmp.lt.s32.totalorder %s19, 1
      %s284 = scalar_select %p283, %s19, 1
      %s285 = smul.addr %s284, 2
      %s286 = smul.addr %s285, 8
      %s287 = scalar_lea.vmem %s1, %s286
      %p288 = scmp.lt.s32.totalorder %s19, 1
      %s289 = scalar_select %p288, %s19, 1
      %s290 = smul.addr %s289, 2
      %s291 = smul.addr %s290, 8
      %s292 = scalar_lea.vmem %s2, %s291
      %s293 = smul.u32 2, %s20
      %p294 = scmp.lt.s32.totalorder %s19, 1
      %s295 = scalar_select %p294, %s19, 1
      %p296 = scmp.lt.s32.totalorder %s293, 1
      %s297 = scalar_select %p296, %s293, 1
      %s298 = smul.addr %s295, 8
      %s299 = sadd.s32 %s297, %s298
      %s300 = smul.addr %s299, 2
      %s301 = scalar_lea.vmem %s3, %s300
      %s302 = smul.u32 2, %s20
      %s303 = smul.u32 2, %s20
      %p304 = scmp.lt.s32.totalorder %s19, 1
      %s305 = scalar_select %p304, %s19, 1
      %p306 = scmp.lt.s32.totalorder %s303, 1
      %s307 = scalar_select %p306, %s303, 1
      %s308 = smul.addr %s305, 2
      %s309 = sadd.s32 %s307, %s308
      %s310 = smul.addr %s309, 8
      %s311 = scalar_lea.vmem %s4, %s310
      %s312 = smul.u32 2, %s20
      %v315 = vld [vmem:[%s281] sm:$0xff]
      %v316 = vld [vmem:[%s281 + $0x8] sm:$0xff]
      %v317 = vld [vmem:[%s287] sm:$0xff]
      %v318 = vld [vmem:[%s287 + $0x8] sm:$0xff]
      %v319 = vld [vmem:[%s292] sm:$0xff]
      %v320 = vld [vmem:[%s292 + $0x8] sm:$0xff]
      %v321 = vld [vmem:[%s301] sm:$0x3]
      %v322 = vld [vmem:[%s301 + $0x2] sm:$0x3]
      %vm323 = vcmask 261120
      %v325 = vsel %vm323, %v315, 0
      %v328 = vsel %vm323, %v316, 0
      %v331 = vsel %vm323, %v317, 0
      %v334 = vsel %vm323, %v318, 0
      %336 = vmatprep.subr.mxu0 0.0
      %337 = vmatpush1.xpose.msra.mxu0 %v331
      %338 = vmatprep.subr.mxu0 0.0
      %339 = vmatpush1.xpose.msra.mxu0 %v334
      %340 = vmatprep.subr.mxu0 0.0
      %341 = vmatpush1.xpose.msra.mxu0 0.0
      %342 = vmatprep.subr.mxu0 0.0
      %343 = vmatpush1.xpose.msra.mxu0 0.0
      %344 = vmatprep.subr.mxu0 0.0
      %345 = vmatpush1.xpose.msra.mxu0 0.0
      %346 = vmatprep.subr.mxu0 0.0
      %347 = vmatpush1.xpose.msra.mxu0 0.0
      %348 = vmatprep.subr.mxu0 0.0
      %349 = vmatpush1.xpose.msra.mxu0 0.0
      %350 = vmatprep.subr.mxu0 0.0
      %351 = vmatpush1.xpose.msra.mxu0 0.0
      %352 = vmatprep.subr.mxu0 0.0
      %353 = vmatpush1.xpose.msra.mxu0 0.0
      %354 = vmatprep.subr.mxu0 0.0
      %355 = vmatpush1.xpose.msra.mxu0 0.0
      %356 = vmatprep.subr.mxu0 0.0
      %357 = vmatpush1.xpose.msra.mxu0 0.0
      %358 = vmatprep.subr.mxu0 0.0
      %359 = vmatpush1.xpose.msra.mxu0 0.0
      %360 = vmatprep.subr.mxu0 0.0
      %361 = vmatpush1.xpose.msra.mxu0 0.0
      %362 = vmatprep.subr.mxu0 0.0
      %363 = vmatpush1.xpose.msra.mxu0 0.0
      %364 = vmatprep.subr.mxu0 0.0
      %365 = vmatpush1.xpose.msra.mxu0 0.0
      %366 = vmatprep.subr.mxu0 0.0
      %367 = vmatpush1.xpose.msra.mxu0 0.0
      %368 = vmatprep.subr.mxu0 0.0
      %369 = vmatpush1.xpose.msra.mxu0 0.0
      %370 = vmatprep.subr.mxu0 0.0
      %371 = vmatpush1.xpose.msra.mxu0 0.0
      %372 = vmatprep.subr.mxu0 0.0
      %373 = vmatpush1.xpose.msra.mxu0 0.0
      %374 = vmatprep.subr.mxu0 0.0
      %375 = vmatpush1.xpose.msra.mxu0 0.0
      %376 = vmatprep.subr.mxu0 0.0
      %377 = vmatpush1.xpose.msra.mxu0 0.0
      %378 = vmatprep.subr.mxu0 0.0
      %379 = vmatpush1.xpose.msra.mxu0 0.0
      %380 = vmatprep.subr.mxu0 0.0
      %381 = vmatpush1.xpose.msra.mxu0 0.0
      %382 = vmatprep.subr.mxu0 0.0
      %383 = vmatpush1.xpose.msra.mxu0 0.0
      %384 = vmatprep.subr.mxu0 0.0
      %385 = vmatpush1.xpose.msra.mxu0 0.0
      %386 = vmatprep.subr.mxu0 0.0
      %387 = vmatpush1.xpose.msra.mxu0 0.0
      %388 = vmatprep.subr.mxu0 0.0
      %389 = vmatpush1.xpose.msra.mxu0 0.0
      %390 = vmatprep.subr.mxu0 0.0
      %391 = vmatpush1.xpose.msra.mxu0 0.0
      %392 = vmatprep.subr.mxu0 0.0
      %393 = vmatpush1.xpose.msra.mxu0 0.0
      %394 = vmatprep.subr.mxu0 0.0
      %395 = vmatpush1.xpose.msra.mxu0 0.0
      %396 = vmatprep.subr.mxu0 0.0
      %397 = vmatpush1.xpose.msra.mxu0 0.0
      %398 = vmatprep.subr.mxu0 0.0
      %399 = vmatpush1.xpose.msra.mxu0 0.0
      %400 = vmatprep.mubr.f32.mxu0 0.0
      %401 = vmatmul.mubr.f32.gmra.mrb[0].mxu0 %v325
      %v402 = vpop.f32.mrb[0].mxu0
      %v403 = vadd.f32 0.0, %v402
      %v404 = vpop.f32.mrb[0].mxu0
      %405 = vmatprep.mubr.f32.mxu0 0.0
      %406 = vmatmul.mubr.f32.gmra.mrb[0].mxu0 %v328
      %v407 = vpop.f32.mrb[0].mxu0
      %v408 = vadd.f32 0.0, %v407
      %v409 = vpop.f32.mrb[0].mxu0
      %410 = vdwg.mxu0
      %vm411 = vnez %v321
      %vm412 = vnez %v322
      %v413 = vsel %vm411, 16843009, 0
      %v414 = vsel %vm412, 16843009, 0
      %v415 = vunpack.c.0.s8 %v413
      %v416 = vunpack.c.0.s8 %v414
      %vm417 = vcmp.ne.s32.totalorder %v415, 0
      %vm418 = vcmp.ne.s32.totalorder %v416, 0
      %v419 = vsel %vm417, 1e-09, %v403
      %v420 = vsel %vm418, 1e-09, %v408
      %vm421 = vcmask 130048
      %v422 = vsel %vm421, %v419, -inf
      %423 = vmax.xlane.f32.xlu0 %v422
      %v424 = vpop.xlane.xlu0 %423
      %v425 = vsel %vm421, %v420, -inf
      %426 = vmax.xlane.f32.xlu0 %v425
      %v427 = vpop.xlane.xlu0 %426
      %v428 = vsub.f32 %v419, %v424
      %v429 = vsub.f32 %v420, %v427
      %v430 = vmul.f32 %v428, 1.442695
      %v431 = vpow.pop %v430
      %v432 = vmul.f32 %v429, 1.442695
      %v433 = vpow.pop %v432
      %v434 = vsel %vm421, %v431, 0.0
      %435 = vadd.xlane.f32.xlu0 %v434
      %v436 = vpop.xlane.xlu0 %435
      %v437 = vsel %vm421, %v433, 0.0
      %438 = vadd.xlane.f32.xlu0 %v437
      %v439 = vpop.xlane.xlu0 %438
      %v441 = vsel %vm421, %v431, 0
      %v444 = vsel %vm421, %v433, 0
      %446 = vmatprep.subr.mxu0 0.0
      %447 = vmatpush1.msra.mxu0 %v319
      %448 = vmatprep.subr.mxu0 0.0
      %449 = vmatpush1.msra.mxu0 %v320
      %450 = vmatprep.subr.mxu0 0.0
      %451 = vmatpush1.msra.mxu0 0.0
      %452 = vmatprep.subr.mxu0 0.0
      %453 = vmatpush1.msra.mxu0 0.0
      %454 = vmatprep.subr.mxu0 0.0
      %455 = vmatpush1.msra.mxu0 0.0
      %456 = vmatprep.subr.mxu0 0.0
      %457 = vmatpush1.msra.mxu0 0.0
      %458 = vmatprep.subr.mxu0 0.0
      %459 = vmatpush1.msra.mxu0 0.0
      %460 = vmatprep.subr.mxu0 0.0
      %461 = vmatpush1.msra.mxu0 0.0
      %462 = vmatprep.subr.mxu0 0.0
      %463 = vmatpush1.msra.mxu0 0.0
      %464 = vmatprep.subr.mxu0 0.0
      %465 = vmatpush1.msra.mxu0 0.0
      %466 = vmatprep.subr.mxu0 0.0
      %467 = vmatpush1.msra.mxu0 0.0
      %468 = vmatprep.subr.mxu0 0.0
      %469 = vmatpush1.msra.mxu0 0.0
      %470 = vmatprep.subr.mxu0 0.0
      %471 = vmatpush1.msra.mxu0 0.0
      %472 = vmatprep.subr.mxu0 0.0
      %473 = vmatpush1.msra.mxu0 0.0
      %474 = vmatprep.subr.mxu0 0.0
      %475 = vmatpush1.msra.mxu0 0.0
      %476 = vmatprep.subr.mxu0 0.0
      %477 = vmatpush1.msra.mxu0 0.0
      %478 = vmatprep.subr.mxu0 0.0
      %479 = vmatpush1.msra.mxu0 0.0
      %480 = vmatprep.subr.mxu0 0.0
      %481 = vmatpush1.msra.mxu0 0.0
      %482 = vmatprep.subr.mxu0 0.0
      %483 = vmatpush1.msra.mxu0 0.0
      %484 = vmatprep.subr.mxu0 0.0
      %485 = vmatpush1.msra.mxu0 0.0
      %486 = vmatprep.subr.mxu0 0.0
      %487 = vmatpush1.msra.mxu0 0.0
      %488 = vmatprep.subr.mxu0 0.0
      %489 = vmatpush1.msra.mxu0 0.0
      %490 = vmatprep.subr.mxu0 0.0
      %491 = vmatpush1.msra.mxu0 0.0
      %492 = vmatprep.subr.mxu0 0.0
      %493 = vmatpush1.msra.mxu0 0.0
      %494 = vmatprep.subr.mxu0 0.0
      %495 = vmatpush1.msra.mxu0 0.0
      %496 = vmatprep.subr.mxu0 0.0
      %497 = vmatpush1.msra.mxu0 0.0
      %498 = vmatprep.subr.mxu0 0.0
      %499 = vmatpush1.msra.mxu0 0.0
      %500 = vmatprep.subr.mxu0 0.0
      %501 = vmatpush1.msra.mxu0 0.0
      %502 = vmatprep.subr.mxu0 0.0
      %503 = vmatpush1.msra.mxu0 0.0
      %504 = vmatprep.subr.mxu0 0.0
      %505 = vmatpush1.msra.mxu0 0.0
      %506 = vmatprep.subr.mxu0 0.0
      %507 = vmatpush1.msra.mxu0 0.0
      %508 = vmatprep.subr.mxu0 0.0
      %509 = vmatpush1.msra.mxu0 0.0
      %510 = vmatprep.mubr.f32.mxu0 0.0
      %511 = vmatmul.mubr.f32.gmra.mrb[0].mxu0 %v441
      %v512 = vpop.f32.mrb[0].mxu0
      %v513 = vadd.f32 0.0, %v512
      %v514 = vpop.f32.mrb[0].mxu0
      %515 = vmatprep.mubr.f32.mxu0 0.0
      %516 = vmatmul.mubr.f32.gmra.mrb[0].mxu0 %v444
      %v517 = vpop.f32.mrb[0].mxu0
      %v518 = vadd.f32 0.0, %v517
      %v519 = vpop.f32.mrb[0].mxu0
      %520 = vdwg.mxu0
      %v521 = vrcp.pop %v436
      %v522 = vmul.f32 %v513, %v521
      %v523 = vrcp.pop %v439
      %v524 = vmul.f32 %v518, %v523
      %525 = vst.msk [vmem:[%s311] sm:$0xff] %vm323, %v522
      %526 = vst.msk [vmem:[%s311 + $0x8] sm:$0xff] %vm323, %v524
      %s527 = scalar_lea.vmem %s301, 4
      %v528 = vld [vmem:[%s527] sm:$0x3]
      %v529 = vld [vmem:[%s527 + $0x2] sm:$0x3]
      %530 = vrot.lane.b32.xlu0 %v315, 96
      %v531 = vpop.permute.xlu0 %530
      %532 = vrot.lane.b32.xlu0 %v316, 96
      %v533 = vpop.permute.xlu0 %532
      %534 = vrot.lane.b32.xlu0 %v317, 96
      %v535 = vpop.permute.xlu0 %534
      %536 = vrot.lane.b32.xlu0 %v318, 96
      %v537 = vpop.permute.xlu0 %536
      %v538 = vsel %vm323, %v531, 0
      %v540 = vsel %vm323, %v533, 0
      %v542 = vsel %vm323, %v535, 0
      %v544 = vsel %vm323, %v537, 0
      %546 = vmatprep.subr.mxu0 0.0
      %547 = vmatpush1.xpose.msra.mxu0 %v542
      %548 = vmatprep.subr.mxu0 0.0
      %549 = vmatpush1.xpose.msra.mxu0 %v544
      %550 = vmatprep.subr.mxu0 0.0
      %551 = vmatpush1.xpose.msra.mxu0 0.0
      %552 = vmatprep.subr.mxu0 0.0
      %553 = vmatpush1.xpose.msra.mxu0 0.0
      %554 = vmatprep.subr.mxu0 0.0
      %555 = vmatpush1.xpose.msra.mxu0 0.0
      %556 = vmatprep.subr.mxu0 0.0
      %557 = vmatpush1.xpose.msra.mxu0 0.0
      %558 = vmatprep.subr.mxu0 0.0
      %559 = vmatpush1.xpose.msra.mxu0 0.0
      %560 = vmatprep.subr.mxu0 0.0
      %561 = vmatpush1.xpose.msra.mxu0 0.0
      %562 = vmatprep.subr.mxu0 0.0
      %563 = vmatpush1.xpose.msra.mxu0 0.0
      %564 = vmatprep.subr.mxu0 0.0
      %565 = vmatpush1.xpose.msra.mxu0 0.0
      %566 = vmatprep.subr.mxu0 0.0
      %567 = vmatpush1.xpose.msra.mxu0 0.0
      %568 = vmatprep.subr.mxu0 0.0
      %569 = vmatpush1.xpose.msra.mxu0 0.0
      %570 = vmatprep.subr.mxu0 0.0
      %571 = vmatpush1.xpose.msra.mxu0 0.0
      %572 = vmatprep.subr.mxu0 0.0
      %573 = vmatpush1.xpose.msra.mxu0 0.0
      %574 = vmatprep.subr.mxu0 0.0
      %575 = vmatpush1.xpose.msra.mxu0 0.0
      %576 = vmatprep.subr.mxu0 0.0
      %577 = vmatpush1.xpose.msra.mxu0 0.0
      %578 = vmatprep.subr.mxu0 0.0
      %579 = vmatpush1.xpose.msra.mxu0 0.0
      %580 = vmatprep.subr.mxu0 0.0
      %581 = vmatpush1.xpose.msra.mxu0 0.0
      %582 = vmatprep.subr.mxu0 0.0
      %583 = vmatpush1.xpose.msra.mxu0 0.0
      %584 = vmatprep.subr.mxu0 0.0
      %585 = vmatpush1.xpose.msra.mxu0 0.0
      %586 = vmatprep.subr.mxu0 0.0
      %587 = vmatpush1.xpose.msra.mxu0 0.0
      %588 = vmatprep.subr.mxu0 0.0
      %589 = vmatpush1.xpose.msra.mxu0 0.0
      %590 = vmatprep.subr.mxu0 0.0
      %591 = vmatpush1.xpose.msra.mxu0 0.0
      %592 = vmatprep.subr.mxu0 0.0
      %593 = vmatpush1.xpose.msra.mxu0 0.0
      %594 = vmatprep.subr.mxu0 0.0
      %595 = vmatpush1.xpose.msra.mxu0 0.0
      %596 = vmatprep.subr.mxu0 0.0
      %597 = vmatpush1.xpose.msra.mxu0 0.0
      %598 = vmatprep.subr.mxu0 0.0
      %599 = vmatpush1.xpose.msra.mxu0 0.0
      %600 = vmatprep.subr.mxu0 0.0
      %601 = vmatpush1.xpose.msra.mxu0 0.0
      %602 = vmatprep.subr.mxu0 0.0
      %603 = vmatpush1.xpose.msra.mxu0 0.0
      %604 = vmatprep.subr.mxu0 0.0
      %605 = vmatpush1.xpose.msra.mxu0 0.0
      %606 = vmatprep.subr.mxu0 0.0
      %607 = vmatpush1.xpose.msra.mxu0 0.0
      %608 = vmatprep.subr.mxu0 0.0
      %609 = vmatpush1.xpose.msra.mxu0 0.0
      %610 = vmatprep.mubr.f32.mxu0 0.0
      %611 = vmatmul.mubr.f32.gmra.mrb[0].mxu0 %v538
      %v612 = vpop.f32.mrb[0].mxu0
      %v613 = vadd.f32 0.0, %v612
      %v614 = vpop.f32.mrb[0].mxu0
      %615 = vmatprep.mubr.f32.mxu0 0.0
      %616 = vmatmul.mubr.f32.gmra.mrb[0].mxu0 %v540
      %v617 = vpop.f32.mrb[0].mxu0
      %v618 = vadd.f32 0.0, %v617
      %v619 = vpop.f32.mrb[0].mxu0
      %620 = vdwg.mxu0
      %vm621 = vnez %v528
      %vm622 = vnez %v529
      %v623 = vsel %vm621, 16843009, 0
      %v624 = vsel %vm622, 16843009, 0
      %v625 = vunpack.c.0.s8 %v623
      %v626 = vunpack.c.0.s8 %v624
      %vm627 = vcmp.ne.s32.totalorder %v625, 0
      %vm628 = vcmp.ne.s32.totalorder %v626, 0
      %v629 = vsel %vm627, 1e-09, %v613
      %v630 = vsel %vm628, 1e-09, %v618
      %v631 = vsel %vm421, %v629, -inf
      %632 = vmax.xlane.f32.xlu0 %v631
      %v633 = vpop.xlane.xlu0 %632
      %v634 = vsel %vm421, %v630, -inf
      %635 = vmax.xlane.f32.xlu0 %v634
      %v636 = vpop.xlane.xlu0 %635
      %v637 = vsub.f32 %v629, %v633
      %v638 = vsub.f32 %v630, %v636
      %v639 = vmul.f32 %v637, 1.442695
      %v640 = vpow.pop %v639
      %v641 = vmul.f32 %v638, 1.442695
      %v642 = vpow.pop %v641
      %v643 = vsel %vm421, %v640, 0.0
      %644 = vadd.xlane.f32.xlu0 %v643
      %v645 = vpop.xlane.xlu0 %644
      %v646 = vsel %vm421, %v642, 0.0
      %647 = vadd.xlane.f32.xlu0 %v646
      %v648 = vpop.xlane.xlu0 %647
      %651 = vrot.lane.b32.xlu0 %v319, 96
      %v652 = vpop.permute.xlu0 %651
      %653 = vrot.lane.b32.xlu0 %v320, 96
      %v654 = vpop.permute.xlu0 %653
      %v658 = vsel %vm421, %v640, 0
      %v661 = vsel %vm421, %v642, 0
      %663 = vmatprep.subr.mxu0 0.0
      %664 = vmatpush1.msra.mxu0 %v652
      %665 = vmatprep.subr.mxu0 0.0
      %666 = vmatpush1.msra.mxu0 %v654
      %667 = vmatprep.subr.mxu0 0.0
      %668 = vmatpush1.msra.mxu0 0.0
      %669 = vmatprep.subr.mxu0 0.0
      %670 = vmatpush1.msra.mxu0 0.0
      %671 = vmatprep.subr.mxu0 0.0
      %672 = vmatpush1.msra.mxu0 0.0
      %673 = vmatprep.subr.mxu0 0.0
      %674 = vmatpush1.msra.mxu0 0.0
      %675 = vmatprep.subr.mxu0 0.0
      %676 = vmatpush1.msra.mxu0 0.0
      %677 = vmatprep.subr.mxu0 0.0
      %678 = vmatpush1.msra.mxu0 0.0
      %679 = vmatprep.subr.mxu0 0.0
      %680 = vmatpush1.msra.mxu0 0.0
      %681 = vmatprep.subr.mxu0 0.0
      %682 = vmatpush1.msra.mxu0 0.0
      %683 = vmatprep.subr.mxu0 0.0
      %684 = vmatpush1.msra.mxu0 0.0
      %685 = vmatprep.subr.mxu0 0.0
      %686 = vmatpush1.msra.mxu0 0.0
      %687 = vmatprep.subr.mxu0 0.0
      %688 = vmatpush1.msra.mxu0 0.0
      %689 = vmatprep.subr.mxu0 0.0
      %690 = vmatpush1.msra.mxu0 0.0
      %691 = vmatprep.subr.mxu0 0.0
      %692 = vmatpush1.msra.mxu0 0.0
      %693 = vmatprep.subr.mxu0 0.0
      %694 = vmatpush1.msra.mxu0 0.0
      %695 = vmatprep.subr.mxu0 0.0
      %696 = vmatpush1.msra.mxu0 0.0
      %697 = vmatprep.subr.mxu0 0.0
      %698 = vmatpush1.msra.mxu0 0.0
      %699 = vmatprep.subr.mxu0 0.0
      %700 = vmatpush1.msra.mxu0 0.0
      %701 = vmatprep.subr.mxu0 0.0
      %702 = vmatpush1.msra.mxu0 0.0
      %703 = vmatprep.subr.mxu0 0.0
      %704 = vmatpush1.msra.mxu0 0.0
      %705 = vmatprep.subr.mxu0 0.0
      %706 = vmatpush1.msra.mxu0 0.0
      %707 = vmatprep.subr.mxu0 0.0
      %708 = vmatpush1.msra.mxu0 0.0
      %709 = vmatprep.subr.mxu0 0.0
      %710 = vmatpush1.msra.mxu0 0.0
      %711 = vmatprep.subr.mxu0 0.0
      %712 = vmatpush1.msra.mxu0 0.0
      %713 = vmatprep.subr.mxu0 0.0
      %714 = vmatpush1.msra.mxu0 0.0
      %715 = vmatprep.subr.mxu0 0.0
      %716 = vmatpush1.msra.mxu0 0.0
      %717 = vmatprep.subr.mxu0 0.0
      %718 = vmatpush1.msra.mxu0 0.0
      %719 = vmatprep.subr.mxu0 0.0
      %720 = vmatpush1.msra.mxu0 0.0
      %721 = vmatprep.subr.mxu0 0.0
      %722 = vmatpush1.msra.mxu0 0.0
      %723 = vmatprep.subr.mxu0 0.0
      %724 = vmatpush1.msra.mxu0 0.0
      %725 = vmatprep.subr.mxu0 0.0
      %726 = vmatpush1.msra.mxu0 0.0
      %727 = vmatprep.mubr.f32.mxu0 0.0
      %728 = vmatmul.mubr.f32.gmra.mrb[0].mxu0 %v658
      %v729 = vpop.f32.mrb[0].mxu0
      %v730 = vadd.f32 0.0, %v729
      %v731 = vpop.f32.mrb[0].mxu0
      %732 = vmatprep.mubr.f32.mxu0 0.0
      %733 = vmatmul.mubr.f32.gmra.mrb[0].mxu0 %v661
      %v734 = vpop.f32.mrb[0].mxu0
      %v735 = vadd.f32 0.0, %v734
      %v736 = vpop.f32.mrb[0].mxu0
      %737 = vdwg.mxu0
      %v738 = vrcp.pop %v645
      %v739 = vmul.f32 %v730, %v738
      %v740 = vrcp.pop %v648
      %v741 = vmul.f32 %v735, %v740
      %744 = vrot.lane.b32.xlu0 %v739, 32
      %v745 = vpop.permute.xlu0 %744
      %746 = vrot.lane.b32.xlu0 %v741, 32
      %v747 = vpop.permute.xlu0 %746
      %vm750 = vcmask 523520
      %751 = vst.msk [vmem:[%s311] sm:$0xff] %vm750, %v745
      %752 = vst.msk [vmem:[%s311 + $0x8] sm:$0xff] %vm750, %v747
      %s753 = scalar_lea.vmem %s301, 8
      %v754 = vld [vmem:[%s753] sm:$0x3]
      %v755 = vld [vmem:[%s753 + $0x2] sm:$0x3]
      %756 = vrot.lane.b32.xlu0 %v315, 64
      %v757 = vpop.permute.xlu0 %756
      %758 = vrot.lane.b32.xlu0 %v316, 64
      %v759 = vpop.permute.xlu0 %758
      %760 = vrot.lane.b32.xlu0 %v317, 64
      %v761 = vpop.permute.xlu0 %760
      %762 = vrot.lane.b32.xlu0 %v318, 64
      %v763 = vpop.permute.xlu0 %762
      %v764 = vsel %vm323, %v757, 0
      %v766 = vsel %vm323, %v759, 0
      %v768 = vsel %vm323, %v761, 0
      %v770 = vsel %vm323, %v763, 0
      %772 = vmatprep.subr.mxu0 0.0
      %773 = vmatpush1.xpose.msra.mxu0 %v768
      %774 = vmatprep.subr.mxu0 0.0
      %775 = vmatpush1.xpose.msra.mxu0 %v770
      %776 = vmatprep.subr.mxu0 0.0
      %777 = vmatpush1.xpose.msra.mxu0 0.0
      %778 = vmatprep.subr.mxu0 0.0
      %779 = vmatpush1.xpose.msra.mxu0 0.0
      %780 = vmatprep.subr.mxu0 0.0
      %781 = vmatpush1.xpose.msra.mxu0 0.0
      %782 = vmatprep.subr.mxu0 0.0
      %783 = vmatpush1.xpose.msra.mxu0 0.0
      %784 = vmatprep.subr.mxu0 0.0
      %785 = vmatpush1.xpose.msra.mxu0 0.0
      %786 = vmatprep.subr.mxu0 0.0
      %787 = vmatpush1.xpose.msra.mxu0 0.0
      %788 = vmatprep.subr.mxu0 0.0
      %789 = vmatpush1.xpose.msra.mxu0 0.0
      %790 = vmatprep.subr.mxu0 0.0
      %791 = vmatpush1.xpose.msra.mxu0 0.0
      %792 = vmatprep.subr.mxu0 0.0
      %793 = vmatpush1.xpose.msra.mxu0 0.0
      %794 = vmatprep.subr.mxu0 0.0
      %795 = vmatpush1.xpose.msra.mxu0 0.0
      %796 = vmatprep.subr.mxu0 0.0
      %797 = vmatpush1.xpose.msra.mxu0 0.0
      %798 = vmatprep.subr.mxu0 0.0
      %799 = vmatpush1.xpose.msra.mxu0 0.0
      %800 = vmatprep.subr.mxu0 0.0
      %801 = vmatpush1.xpose.msra.mxu0 0.0
      %802 = vmatprep.subr.mxu0 0.0
      %803 = vmatpush1.xpose.msra.mxu0 0.0
      %804 = vmatprep.subr.mxu0 0.0
      %805 = vmatpush1.xpose.msra.mxu0 0.0
      %806 = vmatprep.subr.mxu0 0.0
      %807 = vmatpush1.xpose.msra.mxu0 0.0
      %808 = vmatprep.subr.mxu0 0.0
      %809 = vmatpush1.xpose.msra.mxu0 0.0
      %810 = vmatprep.subr.mxu0 0.0
      %811 = vmatpush1.xpose.msra.mxu0 0.0
      %812 = vmatprep.subr.mxu0 0.0
      %813 = vmatpush1.xpose.msra.mxu0 0.0
      %814 = vmatprep.subr.mxu0 0.0
      %815 = vmatpush1.xpose.msra.mxu0 0.0
      %816 = vmatprep.subr.mxu0 0.0
      %817 = vmatpush1.xpose.msra.mxu0 0.0
      %818 = vmatprep.subr.mxu0 0.0
      %819 = vmatpush1.xpose.msra.mxu0 0.0
      %820 = vmatprep.subr.mxu0 0.0
      %821 = vmatpush1.xpose.msra.mxu0 0.0
      %822 = vmatprep.subr.mxu0 0.0
      %823 = vmatpush1.xpose.msra.mxu0 0.0
      %824 = vmatprep.subr.mxu0 0.0
      %825 = vmatpush1.xpose.msra.mxu0 0.0
      %826 = vmatprep.subr.mxu0 0.0
      %827 = vmatpush1.xpose.msra.mxu0 0.0
      %828 = vmatprep.subr.mxu0 0.0
      %829 = vmatpush1.xpose.msra.mxu0 0.0
      %830 = vmatprep.subr.mxu0 0.0
      %831 = vmatpush1.xpose.msra.mxu0 0.0
      %832 = vmatprep.subr.mxu0 0.0
      %833 = vmatpush1.xpose.msra.mxu0 0.0
      %834 = vmatprep.subr.mxu0 0.0
      %835 = vmatpush1.xpose.msra.mxu0 0.0
      %836 = vmatprep.mubr.f32.mxu0 0.0
      %837 = vmatmul.mubr.f32.gmra.mrb[0].mxu0 %v764
      %v838 = vpop.f32.mrb[0].mxu0
      %v839 = vadd.f32 0.0, %v838
      %v840 = vpop.f32.mrb[0].mxu0
      %841 = vmatprep.mubr.f32.mxu0 0.0
      %842 = vmatmul.mubr.f32.gmra.mrb[0].mxu0 %v766
      %v843 = vpop.f32.mrb[0].mxu0
      %v844 = vadd.f32 0.0, %v843
      %v845 = vpop.f32.mrb[0].mxu0
      %846 = vdwg.mxu0
      %vm847 = vnez %v754
      %vm848 = vnez %v755
      %v849 = vsel %vm847, 16843009, 0
      %v850 = vsel %vm848, 16843009, 0
      %v851 = vunpack.c.0.s8 %v849
      %v852 = vunpack.c.0.s8 %v850
      %vm853 = vcmp.ne.s32.totalorder %v851, 0
      %vm854 = vcmp.ne.s32.totalorder %v852, 0
      %v855 = vsel %vm853, 1e-09, %v839
      %v856 = vsel %vm854, 1e-09, %v844
      %v857 = vsel %vm421, %v855, -inf
      %858 = vmax.xlane.f32.xlu0 %v857
      %v859 = vpop.xlane.xlu0 %858
      %v860 = vsel %vm421, %v856, -inf
      %861 = vmax.xlane.f32.xlu0 %v860
      %v862 = vpop.xlane.xlu0 %861
      %v863 = vsub.f32 %v855, %v859
      %v864 = vsub.f32 %v856, %v862
      %v865 = vmul.f32 %v863, 1.442695
      %v866 = vpow.pop %v865
      %v867 = vmul.f32 %v864, 1.442695
      %v868 = vpow.pop %v867
      %v869 = vsel %vm421, %v866, 0.0
      %870 = vadd.xlane.f32.xlu0 %v869
      %v871 = vpop.xlane.xlu0 %870
      %v872 = vsel %vm421, %v868, 0.0
      %873 = vadd.xlane.f32.xlu0 %v872
      %v874 = vpop.xlane.xlu0 %873
      %875 = vrot.lane.b32.xlu0 %v319, 64
      %v876 = vpop.permute.xlu0 %875
      %877 = vrot.lane.b32.xlu0 %v320, 64
      %v878 = vpop.permute.xlu0 %877
      %v882 = vsel %vm421, %v866, 0
      %v885 = vsel %vm421, %v868, 0
      %887 = vmatprep.subr.mxu0 0.0
      %888 = vmatpush1.msra.mxu0 %v876
      %889 = vmatprep.subr.mxu0 0.0
      %890 = vmatpush1.msra.mxu0 %v878
      %891 = vmatprep.subr.mxu0 0.0
      %892 = vmatpush1.msra.mxu0 0.0
      %893 = vmatprep.subr.mxu0 0.0
      %894 = vmatpush1.msra.mxu0 0.0
      %895 = vmatprep.subr.mxu0 0.0
      %896 = vmatpush1.msra.mxu0 0.0
      %897 = vmatprep.subr.mxu0 0.0
      %898 = vmatpush1.msra.mxu0 0.0
      %899 = vmatprep.subr.mxu0 0.0
      %900 = vmatpush1.msra.mxu0 0.0
      %901 = vmatprep.subr.mxu0 0.0
      %902 = vmatpush1.msra.mxu0 0.0
      %903 = vmatprep.subr.mxu0 0.0
      %904 = vmatpush1.msra.mxu0 0.0
      %905 = vmatprep.subr.mxu0 0.0
      %906 = vmatpush1.msra.mxu0 0.0
      %907 = vmatprep.subr.mxu0 0.0
      %908 = vmatpush1.msra.mxu0 0.0
      %909 = vmatprep.subr.mxu0 0.0
      %910 = vmatpush1.msra.mxu0 0.0
      %911 = vmatprep.subr.mxu0 0.0
      %912 = vmatpush1.msra.mxu0 0.0
      %913 = vmatprep.subr.mxu0 0.0
      %914 = vmatpush1.msra.mxu0 0.0
      %915 = vmatprep.subr.mxu0 0.0
      %916 = vmatpush1.msra.mxu0 0.0
      %917 = vmatprep.subr.mxu0 0.0
      %918 = vmatpush1.msra.mxu0 0.0
      %919 = vmatprep.subr.mxu0 0.0
      %920 = vmatpush1.msra.mxu0 0.0
      %921 = vmatprep.subr.mxu0 0.0
      %922 = vmatpush1.msra.mxu0 0.0
      %923 = vmatprep.subr.mxu0 0.0
      %924 = vmatpush1.msra.mxu0 0.0
      %925 = vmatprep.subr.mxu0 0.0
      %926 = vmatpush1.msra.mxu0 0.0
      %927 = vmatprep.subr.mxu0 0.0
      %928 = vmatpush1.msra.mxu0 0.0
      %929 = vmatprep.subr.mxu0 0.0
      %930 = vmatpush1.msra.mxu0 0.0
      %931 = vmatprep.subr.mxu0 0.0
      %932 = vmatpush1.msra.mxu0 0.0
      %933 = vmatprep.subr.mxu0 0.0
      %934 = vmatpush1.msra.mxu0 0.0
      %935 = vmatprep.subr.mxu0 0.0
      %936 = vmatpush1.msra.mxu0 0.0
      %937 = vmatprep.subr.mxu0 0.0
      %938 = vmatpush1.msra.mxu0 0.0
      %939 = vmatprep.subr.mxu0 0.0
      %940 = vmatpush1.msra.mxu0 0.0
      %941 = vmatprep.subr.mxu0 0.0
      %942 = vmatpush1.msra.mxu0 0.0
      %943 = vmatprep.subr.mxu0 0.0
      %944 = vmatpush1.msra.mxu0 0.0
      %945 = vmatprep.subr.mxu0 0.0
      %946 = vmatpush1.msra.mxu0 0.0
      %947 = vmatprep.subr.mxu0 0.0
      %948 = vmatpush1.msra.mxu0 0.0
      %949 = vmatprep.subr.mxu0 0.0
      %950 = vmatpush1.msra.mxu0 0.0
      %951 = vmatprep.mubr.f32.mxu0 0.0
      %952 = vmatmul.mubr.f32.gmra.mrb[0].mxu0 %v882
      %v953 = vpop.f32.mrb[0].mxu0
      %v954 = vadd.f32 0.0, %v953
      %v955 = vpop.f32.mrb[0].mxu0
      %956 = vmatprep.mubr.f32.mxu0 0.0
      %957 = vmatmul.mubr.f32.gmra.mrb[0].mxu0 %v885
      %v958 = vpop.f32.mrb[0].mxu0
      %v959 = vadd.f32 0.0, %v958
      %v960 = vpop.f32.mrb[0].mxu0
      %961 = vdwg.mxu0
      %v962 = vrcp.pop %v871
      %v963 = vmul.f32 %v954, %v962
      %v964 = vrcp.pop %v874
      %v965 = vmul.f32 %v959, %v964
      %968 = vrot.lane.b32.xlu0 %v963, 64
      %v969 = vpop.permute.xlu0 %968
      %970 = vrot.lane.b32.xlu0 %v965, 64
      %v971 = vpop.permute.xlu0 %970
      %vm974 = vcmask 785920
      %975 = vst.msk [vmem:[%s311] sm:$0xff] %vm974, %v969
      %976 = vst.msk [vmem:[%s311 + $0x8] sm:$0xff] %vm974, %v971
      %s977 = scalar_lea.vmem %s301, 12
      %v978 = vld [vmem:[%s977] sm:$0x3]
      %v979 = vld [vmem:[%s977 + $0x2] sm:$0x3]
      %980 = vrot.lane.b32.xlu0 %v315, 32
      %v981 = vpop.permute.xlu0 %980
      %982 = vrot.lane.b32.xlu0 %v316, 32
      %v983 = vpop.permute.xlu0 %982
      %984 = vrot.lane.b32.xlu0 %v317, 32
      %v985 = vpop.permute.xlu0 %984
      %986 = vrot.lane.b32.xlu0 %v318, 32
      %v987 = vpop.permute.xlu0 %986
      %v988 = vsel %vm323, %v981, 0
      %v990 = vsel %vm323, %v983, 0
      %v992 = vsel %vm323, %v985, 0
      %v994 = vsel %vm323, %v987, 0
      %996 = vmatprep.subr.mxu0 0.0
      %997 = vmatpush1.xpose.msra.mxu0 %v992
      %998 = vmatprep.subr.mxu0 0.0
      %999 = vmatpush1.xpose.msra.mxu0 %v994
      %1000 = vmatprep.subr.mxu0 0.0
      %1001 = vmatpush1.xpose.msra.mxu0 0.0
      %1002 = vmatprep.subr.mxu0 0.0
      %1003 = vmatpush1.xpose.msra.mxu0 0.0
      %1004 = vmatprep.subr.mxu0 0.0
      %1005 = vmatpush1.xpose.msra.mxu0 0.0
      %1006 = vmatprep.subr.mxu0 0.0
      %1007 = vmatpush1.xpose.msra.mxu0 0.0
      %1008 = vmatprep.subr.mxu0 0.0
      %1009 = vmatpush1.xpose.msra.mxu0 0.0
      %1010 = vmatprep.subr.mxu0 0.0
      %1011 = vmatpush1.xpose.msra.mxu0 0.0
      %1012 = vmatprep.subr.mxu0 0.0
      %1013 = vmatpush1.xpose.msra.mxu0 0.0
      %1014 = vmatprep.subr.mxu0 0.0
      %1015 = vmatpush1.xpose.msra.mxu0 0.0
      %1016 = vmatprep.subr.mxu0 0.0
      %1017 = vmatpush1.xpose.msra.mxu0 0.0
      %1018 = vmatprep.subr.mxu0 0.0
      %1019 = vmatpush1.xpose.msra.mxu0 0.0
      %1020 = vmatprep.subr.mxu0 0.0
      %1021 = vmatpush1.xpose.msra.mxu0 0.0
      %1022 = vmatprep.subr.mxu0 0.0
      %1023 = vmatpush1.xpose.msra.mxu0 0.0
      %1024 = vmatprep.subr.mxu0 0.0
      %1025 = vmatpush1.xpose.msra.mxu0 0.0
      %1026 = vmatprep.subr.mxu0 0.0
      %1027 = vmatpush1.xpose.msra.mxu0 0.0
      %1028 = vmatprep.subr.mxu0 0.0
      %1029 = vmatpush1.xpose.msra.mxu0 0.0
      %1030 = vmatprep.subr.mxu0 0.0
      %1031 = vmatpush1.xpose.msra.mxu0 0.0
      %1032 = vmatprep.subr.mxu0 0.0
      %1033 = vmatpush1.xpose.msra.mxu0 0.0
      %1034 = vmatprep.subr.mxu0 0.0
      %1035 = vmatpush1.xpose.msra.mxu0 0.0
      %1036 = vmatprep.subr.mxu0 0.0
      %1037 = vmatpush1.xpose.msra.mxu0 0.0
      %1038 = vmatprep.subr.mxu0 0.0
      %1039 = vmatpush1.xpose.msra.mxu0 0.0
      %1040 = vmatprep.subr.mxu0 0.0
      %1041 = vmatpush1.xpose.msra.mxu0 0.0
      %1042 = vmatprep.subr.mxu0 0.0
      %1043 = vmatpush1.xpose.msra.mxu0 0.0
      %1044 = vmatprep.subr.mxu0 0.0
      %1045 = vmatpush1.xpose.msra.mxu0 0.0
      %1046 = vmatprep.subr.mxu0 0.0
      %1047 = vmatpush1.xpose.msra.mxu0 0.0
      %1048 = vmatprep.subr.mxu0 0.0
      %1049 = vmatpush1.xpose.msra.mxu0 0.0
      %1050 = vmatprep.subr.mxu0 0.0
      %1051 = vmatpush1.xpose.msra.mxu0 0.0
      %1052 = vmatprep.subr.mxu0 0.0
      %1053 = vmatpush1.xpose.msra.mxu0 0.0
      %1054 = vmatprep.subr.mxu0 0.0
      %1055 = vmatpush1.xpose.msra.mxu0 0.0
      %1056 = vmatprep.subr.mxu0 0.0
      %1057 = vmatpush1.xpose.msra.mxu0 0.0
      %1058 = vmatprep.subr.mxu0 0.0
      %1059 = vmatpush1.xpose.msra.mxu0 0.0
      %1060 = vmatprep.mubr.f32.mxu0 0.0
      %1061 = vmatmul.mubr.f32.gmra.mrb[0].mxu0 %v988
      %v1062 = vpop.f32.mrb[0].mxu0
      %v1063 = vadd.f32 0.0, %v1062
      %v1064 = vpop.f32.mrb[0].mxu0
      %1065 = vmatprep.mubr.f32.mxu0 0.0
      %1066 = vmatmul.mubr.f32.gmra.mrb[0].mxu0 %v990
      %v1067 = vpop.f32.mrb[0].mxu0
      %v1068 = vadd.f32 0.0, %v1067
      %v1069 = vpop.f32.mrb[0].mxu0
      %1070 = vdwg.mxu0
      %vm1071 = vnez %v978
      %vm1072 = vnez %v979
      %v1073 = vsel %vm1071, 16843009, 0
      %v1074 = vsel %vm1072, 16843009, 0
      %v1075 = vunpack.c.0.s8 %v1073
      %v1076 = vunpack.c.0.s8 %v1074
      %vm1077 = vcmp.ne.s32.totalorder %v1075, 0
      %vm1078 = vcmp.ne.s32.totalorder %v1076, 0
      %v1079 = vsel %vm1077, 1e-09, %v1063
      %v1080 = vsel %vm1078, 1e-09, %v1068
      %v1081 = vsel %vm421, %v1079, -inf
      %1082 = vmax.xlane.f32.xlu0 %v1081
      %v1083 = vpop.xlane.xlu0 %1082
      %v1084 = vsel %vm421, %v1080, -inf
      %1085 = vmax.xlane.f32.xlu0 %v1084
      %v1086 = vpop.xlane.xlu0 %1085
      %v1087 = vsub.f32 %v1079, %v1083
      %v1088 = vsub.f32 %v1080, %v1086
      %v1089 = vmul.f32 %v1087, 1.442695
      %v1090 = vpow.pop %v1089
      %v1091 = vmul.f32 %v1088, 1.442695
      %v1092 = vpow.pop %v1091
      %v1093 = vsel %vm421, %v1090, 0.0
      %1094 = vadd.xlane.f32.xlu0 %v1093
      %v1095 = vpop.xlane.xlu0 %1094
      %v1096 = vsel %vm421, %v1092, 0.0
      %1097 = vadd.xlane.f32.xlu0 %v1096
      %v1098 = vpop.xlane.xlu0 %1097
      %1099 = vrot.lane.b32.xlu0 %v319, 32
      %v1100 = vpop.permute.xlu0 %1099
      %1101 = vrot.lane.b32.xlu0 %v320, 32
      %v1102 = vpop.permute.xlu0 %1101
      %v1106 = vsel %vm421, %v1090, 0
      %v1109 = vsel %vm421, %v1092, 0
      %1111 = vmatprep.subr.mxu0 0.0
      %1112 = vmatpush1.msra.mxu0 %v1100
      %1113 = vmatprep.subr.mxu0 0.0
      %1114 = vmatpush1.msra.mxu0 %v1102
      %1115 = vmatprep.subr.mxu0 0.0
      %1116 = vmatpush1.msra.mxu0 0.0
      %1117 = vmatprep.subr.mxu0 0.0
      %1118 = vmatpush1.msra.mxu0 0.0
      %1119 = vmatprep.subr.mxu0 0.0
      %1120 = vmatpush1.msra.mxu0 0.0
      %1121 = vmatprep.subr.mxu0 0.0
      %1122 = vmatpush1.msra.mxu0 0.0
      %1123 = vmatprep.subr.mxu0 0.0
      %1124 = vmatpush1.msra.mxu0 0.0
      %1125 = vmatprep.subr.mxu0 0.0
      %1126 = vmatpush1.msra.mxu0 0.0
      %1127 = vmatprep.subr.mxu0 0.0
      %1128 = vmatpush1.msra.mxu0 0.0
      %1129 = vmatprep.subr.mxu0 0.0
      %1130 = vmatpush1.msra.mxu0 0.0
      %1131 = vmatprep.subr.mxu0 0.0
      %1132 = vmatpush1.msra.mxu0 0.0
      %1133 = vmatprep.subr.mxu0 0.0
      %1134 = vmatpush1.msra.mxu0 0.0
      %1135 = vmatprep.subr.mxu0 0.0
      %1136 = vmatpush1.msra.mxu0 0.0
      %1137 = vmatprep.subr.mxu0 0.0
      %1138 = vmatpush1.msra.mxu0 0.0
      %1139 = vmatprep.subr.mxu0 0.0
      %1140 = vmatpush1.msra.mxu0 0.0
      %1141 = vmatprep.subr.mxu0 0.0
      %1142 = vmatpush1.msra.mxu0 0.0
      %1143 = vmatprep.subr.mxu0 0.0
      %1144 = vmatpush1.msra.mxu0 0.0
      %1145 = vmatprep.subr.mxu0 0.0
      %1146 = vmatpush1.msra.mxu0 0.0
      %1147 = vmatprep.subr.mxu0 0.0
      %1148 = vmatpush1.msra.mxu0 0.0
      %1149 = vmatprep.subr.mxu0 0.0
      %1150 = vmatpush1.msra.mxu0 0.0
      %1151 = vmatprep.subr.mxu0 0.0
      %1152 = vmatpush1.msra.mxu0 0.0
      %1153 = vmatprep.subr.mxu0 0.0
      %1154 = vmatpush1.msra.mxu0 0.0
      %1155 = vmatprep.subr.mxu0 0.0
      %1156 = vmatpush1.msra.mxu0 0.0
      %1157 = vmatprep.subr.mxu0 0.0
      %1158 = vmatpush1.msra.mxu0 0.0
      %1159 = vmatprep.subr.mxu0 0.0
      %1160 = vmatpush1.msra.mxu0 0.0
      %1161 = vmatprep.subr.mxu0 0.0
      %1162 = vmatpush1.msra.mxu0 0.0
      %1163 = vmatprep.subr.mxu0 0.0
      %1164 = vmatpush1.msra.mxu0 0.0
      %1165 = vmatprep.subr.mxu0 0.0
      %1166 = vmatpush1.msra.mxu0 0.0
      %1167 = vmatprep.subr.mxu0 0.0
      %1168 = vmatpush1.msra.mxu0 0.0
      %1169 = vmatprep.subr.mxu0 0.0
      %1170 = vmatpush1.msra.mxu0 0.0
      %1171 = vmatprep.subr.mxu0 0.0
      %1172 = vmatpush1.msra.mxu0 0.0
      %1173 = vmatprep.subr.mxu0 0.0
      %1174 = vmatpush1.msra.mxu0 0.0
      %1175 = vmatprep.mubr.f32.mxu0 0.0
      %1176 = vmatmul.mubr.f32.gmra.mrb[0].mxu0 %v1106
      %v1177 = vpop.f32.mrb[0].mxu0
      %v1178 = vadd.f32 0.0, %v1177
      %v1179 = vpop.f32.mrb[0].mxu0
      %1180 = vmatprep.mubr.f32.mxu0 0.0
      %1181 = vmatmul.mubr.f32.gmra.mrb[0].mxu0 %v1109
      %v1182 = vpop.f32.mrb[0].mxu0
      %v1183 = vadd.f32 0.0, %v1182
      %v1184 = vpop.f32.mrb[0].mxu0
      %1185 = vdwg.mxu0
      %v1186 = vrcp.pop %v1095
      %v1187 = vmul.f32 %v1178, %v1186
      %v1188 = vrcp.pop %v1098
      %v1189 = vmul.f32 %v1183, %v1188
      %1192 = vrot.lane.b32.xlu0 %v1187, 96
      %v1193 = vpop.permute.xlu0 %1192
      %1194 = vrot.lane.b32.xlu0 %v1189, 96
      %v1195 = vpop.permute.xlu0 %1194
      %vm1198 = vcmask 1048320
      %1199 = vst.msk [vmem:[%s311] sm:$0xff] %vm1198, %v1193
      %1200 = vst.msk [vmem:[%s311 + $0x8] sm:$0xff] %vm1198, %v1195
      %s1201 = smul.u32 2, %s20
      %p1202 = scmp.lt.s32.totalorder %s19, 1
      %s1203 = scalar_select %p1202, %s19, 1
      %p1204 = scmp.lt.s32.totalorder %s1201, 1
      %s1205 = scalar_select %p1204, %s1201, 1
      %s1206 = smul.addr %s1203, 2
      %s1207 = sadd.s32 %s1205, %s1206
      %s1208 = smul.addr %s1207, 8
      %s1209 = scalar_lea.vmem %s4, %s1208
      // Predicated region
      $region37: #{multi_head_attention.8} parent=35 // pred_check
        %p1210 = pneg %p155
      $region38: #{multi_head_attention.8} parent=35 // pred_check_branch
        %1212 = sbr.rel (%p1210) target = $region40
      $region39: #{multi_head_attention.8} parent=35 // pred_region
        %s1213 = smul.u32 2, %s20
      $region40: #{multi_head_attention.8} parent=35 // pred_fallthru
        _
    $region36: #{multi_head_attention.8} parent=5 // pred_fallthru
      _
    %p1214 = scmp.le.s32.totalorder 2, %s10
    // Predicated region
    $region41: #{multi_head_attention.8} parent=5 // pred_check
      %p1215 = pneg %p1214
    $region42: #{multi_head_attention.8} parent=5 // pred_check_branch
      %1217 = sbr.rel (%p1215) target = $region44
    $region43: #{multi_head_attention.8} parent=5 // pred_region
      %s1218 = ssub.s32 %s10, 2
      // Predicated region
      $region45: #{multi_head_attention.8} parent=43 // pred_check
        %p1219 = pneg %p161
      $region46: #{multi_head_attention.8} parent=43 // pred_check_branch
        %1221 = sbr.rel (%p1219) target = $region48
      $region47: #{multi_head_attention.8} parent=43 // pred_region
        %s1222 = smul.u32 2, %s22
        %p1223 = scmp.lt.s32.totalorder %s21, 1
        %s1224 = scalar_select %p1223, %s21, 1
        %p1225 = scmp.lt.s32.totalorder %s1222, 1
        %s1226 = scalar_select %p1225, %s1222, 1
        %s1227 = smul.addr %s1224, 2
        %s1228 = sadd.s32 %s1226, %s1227
        %s1229 = smul.addr %s1228, 8
        %s1230 = scalar_lea.vmem %s4, %s1229
      $region48: #{multi_head_attention.8} parent=43 // pred_fallthru
        _
    $region44: #{multi_head_attention.8} parent=5 // pred_fallthru
      _
  $region6: #{multi_head_attention.8} parent=0 // loop_footer
    %s14 = sadd.s32 1, %s10
  $region7: #{multi_head_attention.8} parent=0 // loop_footer_branch
    %9 = sbr.rel target = $region3
  $region8: #{multi_head_attention.8} parent=0 // loop_exit
    _

// kernel: multi_head_attention.9
$region0: #{multi_head_attention.9}
  #allocation0 [shape = 'u32[]', space=smem, size = 0x4, offset = 0x4, fixed_abs, tag = 'smem constant byte address 0x4 - core index']
  #allocation1 [shape = 'u32[144,128]{1,0:T(1,128)}', space=vmem, size = 0x12000, scoped, tag = 'internal scratch']
  %s0 = inlined_call_operand.vmem [shape: f32[32,128], index: 0, kind: input, shape index: {}]
  %s1 = inlined_call_operand.vmem [shape: f32[128,64], index: 1, kind: input, shape index: {}]
  %s2 = inlined_call_operand.vmem [shape: f32[1,64], index: 2, kind: input, shape index: {}]
  %s3 = inlined_call_operand.hbm [shape: f32[32,64], index: 3, kind: output, shape index: {}]
  %s4 = sld [smem:[#allocation0]]
  $region22: #{multi_head_attention.9} parent=0
    _
  %s6 = ssub.s32 1, %s4
  %s7 = scalar_select 0, %s6, %s4
  $region1: #{multi_head_attention.9} parent=0
    #allocation2 [shape = 'u8[16384]{0}', space=vmem, size = 0x4000, scoped, tag = 'output window, operand 0, single buffered']
    #allocation3 [shape = 's32[1]{0}', space=sflag, size = 0x4, scoped, tag = 'scoped memory for multi_head_attention.9']
    %8 = vsyncpa [#allocation3], 0
    // Predicated region
    $region2: #{multi_head_attention.9} parent=1 // pred_check
      _
    $region3: #{multi_head_attention.9} parent=1 // pred_check_branch
      %10 = sbr.rel (0) target = $region5
    $region4: #{multi_head_attention.9} parent=1 // pred_region
      _
    $region5: #{multi_head_attention.9} parent=1 // pred_fallthru
      _
    // Predicated region
    $region6: #{multi_head_attention.9} parent=1 // pred_check
      _
    $region7: #{multi_head_attention.9} parent=1 // pred_check_branch
      %12 = sbr.rel (0) target = $region9
    $region8: #{multi_head_attention.9} parent=1 // pred_region
      _
    $region9: #{multi_head_attention.9} parent=1 // pred_fallthru
      _
    // Predicated region
    $region10: #{multi_head_attention.9} parent=1 // pred_check
      _
    $region11: #{multi_head_attention.9} parent=1 // pred_check_branch
      %14 = sbr.rel (0) target = $region13
    $region12: #{multi_head_attention.9} parent=1 // pred_region
      _
    $region13: #{multi_head_attention.9} parent=1 // pred_fallthru
      _
    %v15 = vld [vmem:[%s0] sm:$0xff]
    %v16 = vld [vmem:[%s0 + $0x8] sm:$0xff]
    %v17 = vld [vmem:[%s0 + $0x10] sm:$0xff]
    %v18 = vld [vmem:[%s0 + $0x18] sm:$0xff]
    %v19 = vld [vmem:[%s1] sm:$0xff]
    %v20 = vld [vmem:[%s1 + $0x8] sm:$0xff]
    %v21 = vld [vmem:[%s1 + $0x10] sm:$0xff]
    %v22 = vld [vmem:[%s1 + $0x18] sm:$0xff]
    %v23 = vld [vmem:[%s1 + $0x20] sm:$0xff]
    %v24 = vld [vmem:[%s1 + $0x28] sm:$0xff]
    %v25 = vld [vmem:[%s1 + $0x30] sm:$0xff]
    %v26 = vld [vmem:[%s1 + $0x38] sm:$0xff]
    %v27 = vld [vmem:[%s1 + $0x40] sm:$0xff]
    %v28 = vld [vmem:[%s1 + $0x48] sm:$0xff]
    %v29 = vld [vmem:[%s1 + $0x50] sm:$0xff]
    %v30 = vld [vmem:[%s1 + $0x58] sm:$0xff]
    %v31 = vld [vmem:[%s1 + $0x60] sm:$0xff]
    %v32 = vld [vmem:[%s1 + $0x68] sm:$0xff]
    %v33 = vld [vmem:[%s1 + $0x70] sm:$0xff]
    %v34 = vld [vmem:[%s1 + $0x78] sm:$0xff]
    %v35 = vld [vmem:[%s2] sm:$0x1]
    %v37 = vlaneseq
    %v38 = vshrl.u32 %v37, 7
    %v39 = vsub.s32 0, %v38
    %v40 = vrot.slane %v35, %v39
    %42 = vmatprep.subr.mxu0 0.0
    %43 = vmatpush1.msra.mxu0 %v19
    %44 = vmatprep.subr.mxu0 0.0
    %45 = vmatpush1.msra.mxu0 %v20
    %46 = vmatprep.subr.mxu0 0.0
    %47 = vmatpush1.msra.mxu0 %v21
    %48 = vmatprep.subr.mxu0 0.0
    %49 = vmatpush1.msra.mxu0 %v22
    %50 = vmatprep.subr.mxu0 0.0
    %51 = vmatpush1.msra.mxu0 %v23
    %52 = vmatprep.subr.mxu0 0.0
    %53 = vmatpush1.msra.mxu0 %v24
    %54 = vmatprep.subr.mxu0 0.0
    %55 = vmatpush1.msra.mxu0 %v25
    %56 = vmatprep.subr.mxu0 0.0
    %57 = vmatpush1.msra.mxu0 %v26
    %58 = vmatprep.subr.mxu0 0.0
    %59 = vmatpush1.msra.mxu0 %v27
    %60 = vmatprep.subr.mxu0 0.0
    %61 = vmatpush1.msra.mxu0 %v28
    %62 = vmatprep.subr.mxu0 0.0
    %63 = vmatpush1.msra.mxu0 %v29
    %64 = vmatprep.subr.mxu0 0.0
    %65 = vmatpush1.msra.mxu0 %v30
    %66 = vmatprep.subr.mxu0 0.0
    %67 = vmatpush1.msra.mxu0 %v31
    %68 = vmatprep.subr.mxu0 0.0
    %69 = vmatpush1.msra.mxu0 %v32
    %70 = vmatprep.subr.mxu0 0.0
    %71 = vmatpush1.msra.mxu0 %v33
    %72 = vmatprep.subr.mxu0 0.0
    %73 = vmatpush1.msra.mxu0 %v34
    %74 = vmatprep.subr.mxu0 0.0
    %75 = vmatpush1.msra.mxu0 0.0
    %76 = vmatprep.subr.mxu0 0.0
    %77 = vmatpush1.msra.mxu0 0.0
    %78 = vmatprep.subr.mxu0 0.0
    %79 = vmatpush1.msra.mxu0 0.0
    %80 = vmatprep.subr.mxu0 0.0
    %81 = vmatpush1.msra.mxu0 0.0
    %82 = vmatprep.subr.mxu0 0.0
    %83 = vmatpush1.msra.mxu0 0.0
    %84 = vmatprep.subr.mxu0 0.0
    %85 = vmatpush1.msra.mxu0 0.0
    %86 = vmatprep.subr.mxu0 0.0
    %87 = vmatpush1.msra.mxu0 0.0
    %88 = vmatprep.subr.mxu0 0.0
    %89 = vmatpush1.msra.mxu0 0.0
    %90 = vmatprep.subr.mxu0 0.0
    %91 = vmatpush1.msra.mxu0 0.0
    %92 = vmatprep.subr.mxu0 0.0
    %93 = vmatpush1.msra.mxu0 0.0
    %94 = vmatprep.subr.mxu0 0.0
    %95 = vmatpush1.msra.mxu0 0.0
    %96 = vmatprep.subr.mxu0 0.0
    %97 = vmatpush1.msra.mxu0 0.0
    %98 = vmatprep.subr.mxu0 0.0
    %99 = vmatpush1.msra.mxu0 0.0
    %100 = vmatprep.subr.mxu0 0.0
    %101 = vmatpush1.msra.mxu0 0.0
    %102 = vmatprep.subr.mxu0 0.0
    %103 = vmatpush1.msra.mxu0 0.0
    %104 = vmatprep.subr.mxu0 0.0
    %105 = vmatpush1.msra.mxu0 0.0
    %106 = vmatprep.mubr.f32.mxu0 0.0
    %107 = vmatmul.mubr.f32.gmra.mrb[0].mxu0 %v15
    %v108 = vpop.f32.mrb[0].mxu0
    %v109 = vadd.f32 %v40, %v108
    %v110 = vpop.f32.mrb[0].mxu0
    %111 = vmatprep.mubr.f32.mxu0 0.0
    %112 = vmatmul.mubr.f32.gmra.mrb[0].mxu0 %v16
    %v113 = vpop.f32.mrb[0].mxu0
    %v114 = vadd.f32 %v40, %v113
    %v115 = vpop.f32.mrb[0].mxu0
    %116 = vmatprep.mubr.f32.mxu0 0.0
    %117 = vmatmul.mubr.f32.gmra.mrb[0].mxu0 %v17
    %v118 = vpop.f32.mrb[0].mxu0
    %v119 = vadd.f32 %v40, %v118
    %v120 = vpop.f32.mrb[0].mxu0
    %121 = vmatprep.mubr.f32.mxu0 0.0
    %122 = vmatmul.mubr.f32.gmra.mrb[0].mxu0 %v18
    %v123 = vpop.f32.mrb[0].mxu0
    %v124 = vadd.f32 %v40, %v123
    %v125 = vpop.f32.mrb[0].mxu0
    %126 = vdwg.mxu0
    %vm127 = vcmask 523264
    %128 = vst.msk [vmem:[#allocation2] sm:$0xff] %vm127, %v109
    %129 = vst.msk [vmem:[#allocation2 + $0x8] sm:$0xff] %vm127, %v114
    %130 = vst.msk [vmem:[#allocation2 + $0x10] sm:$0xff] %vm127, %v119
    %131 = vst.msk [vmem:[#allocation2 + $0x18] sm:$0xff] %vm127, %v124
    // Predicated region
    $region14: #{multi_head_attention.9} parent=1 // pred_check
      _
    $region15: #{multi_head_attention.9} parent=1 // pred_check_branch
      %133 = sbr.rel (0) target = $region17
    $region16: #{multi_head_attention.9} parent=1 // pred_region
      %s135 = ssub.s32 512, 512
      %136 = vsyncadd [#allocation3], %s135
      %s137 = sshll.u32 [#allocation2], 4
      %s138 = int_to_ptr.vmem [resolvable:$true] %s137
      %143 = dma.vmem_to_hbm [thread:$0]  %s138, 512, %s3, [#allocation3], 128, 128, 8
    $region17: #{multi_head_attention.9} parent=1 // pred_fallthru
      _
    // Predicated region
    $region18: #{multi_head_attention.9} parent=1 // pred_check
      _
    $region19: #{multi_head_attention.9} parent=1 // pred_check_branch
      %145 = sbr.rel (0) target = $region21
    $region20: #{multi_head_attention.9} parent=1 // pred_region
      %146 = dma.done [#allocation3], 512
    $region21: #{multi_head_attention.9} parent=1 // pred_fallthru
      _
    %147 = vsyncpa [#allocation3], 1

</llo_original>
